<compile_context>
chip_gen: v5e
topology: v5e:2x2
jax: 0.10.0
libtpu: 0.0.40
codegen_flags: <defaults>
</compile_context>

<pallas_src>
import functools
import math

import jax
import jax.numpy as jnp
from jax import lax
from jax.experimental import pallas as pl
from jax.experimental.pallas import tpu as pltpu


def _embed_gather_kernel(ids_ref, e_hbm, pe_ref, out_ref, gbuf, sem,
                         *, chunk, seq_len, n_chunks):
    """One grid step over `tile_rows` flattened (batch*seq) rows.

    ids_ref : SMEM (N_pad,) int32   -- scalar-prefetched flat token ids
    e_hbm   : ANY  (V, Fp)          -- embedding table, left in HBM
    pe_ref  : VMEM (seq_len, Fp)    -- full positional table (resident)
    out_ref : VMEM (tile_rows, Fp)
    gbuf    : VMEM (2, chunk, Fp)   -- double-buffered row-gather scratch
    sem     : DMA sems (2, chunk)
    """
    tile_rows = out_ref.shape[0]
    row0 = pl.program_id(0) * tile_rows

    def start_chunk(c, slot):
        base = row0 + c * chunk
        for j in range(chunk):
            tok = ids_ref[base + j]
            pltpu.make_async_copy(e_hbm.at[pl.ds(tok, 1)],
                                  gbuf.at[slot, pl.ds(j, 1)],
                                  sem.at[slot, j]).start()

    def wait_chunk(slot):
        for j in range(chunk):
            pltpu.make_async_copy(e_hbm.at[pl.ds(0, 1)],
                                  gbuf.at[slot, pl.ds(j, 1)],
                                  sem.at[slot, j]).wait()

    # Prime the pipeline with chunk 0.
    start_chunk(0, 0)

    def body(c, carry):
        slot = c % 2
        # Prefetch the next chunk into the other buffer *before* blocking on
        # the current one (SMEM id reads stay ahead of the semaphore wait).
        @pl.when(c + 1 < n_chunks)
        def _():
            start_chunk(c + 1, 1 - slot)

        wait_chunk(slot)

        off = c * chunk
        pe_off = (row0 + off) % seq_len           # chunk divides seq_len
        if chunk % 8 == 0:
            off = pl.multiple_of(off, 8)
            pe_off = pl.multiple_of(pe_off, 8)

        rows = gbuf[slot]                          # (chunk, Fp) gathered rows
        pe_rows = pe_ref[pl.ds(pe_off, chunk), :]  # (chunk, Fp) positions
        # Fused positional add + single store pass.
        out_ref[pl.ds(off, chunk), :] = (rows + pe_rows).astype(out_ref.dtype)
        return carry

    unroll = n_chunks if n_chunks <= 8 else (
        4 if n_chunks % 4 == 0 else (2 if n_chunks % 2 == 0 else 1))
    lax.fori_loop(0, n_chunks, body, 0, unroll=unroll)


def _round_up(x, m):
    return ((x + m - 1) // m) * m


def _vmem_capacity_bytes():
    try:
        return int(pltpu.get_tpu_info().vmem_capacity_bytes)
    except Exception:
        return 64 * 1024 * 1024    # conservative fallback (v7x per-TC VMEM)


def _choose_chunk(seq_len, max_chunk=16):
    """Rows gathered per DMA burst: a divisor of seq_len (so each chunk's pe
    rows form one contiguous slice), preferring multiples of 8 for aligned
    sublane stores, capped to keep <=16 DMAs in flight per buffer slot."""
    divs = [d for d in range(1, min(seq_len, max_chunk) + 1) if seq_len % d == 0]
    mult8 = [d for d in divs if d % 8 == 0]
    return max(mult8) if mult8 else max(divs)


def _pick_tile_rows(n_rows, quantum, fp, seq_len, chunk, vmem_budget, target=1024):
    """Largest row tile (multiple of `quantum`) whose double-buffered output
    block plus the resident pe table and gather scratch fit the VMEM budget."""
    bytes_per_row = 4 * fp
    fixed = bytes_per_row * (2 * seq_len + 2 * chunk)   # pe (2x slack) + gbuf
    avail = max(vmem_budget - fixed, 2 * bytes_per_row * quantum)
    max_rows = max(quantum, (avail // (2 * bytes_per_row)) // quantum * quantum)
    tile = max(quantum, (min(target, max_rows) // quantum) * quantum)
    tile = min(tile, _round_up(n_rows, quantum))        # don't over-pad tiny inputs
    return tile


def embeddings_forward(x_ids, E, pe):
    """x_ids: (B, L) int; E: (V, F) f32; pe: (maxlen, F) f32 -> (B, L, F) f32."""
    B, L = x_ids.shape
    maxlen, F = pe.shape
    V, F_e = E.shape
    assert F == F_e
    assert L == maxlen, "The context lengths do not match"

    # Lane-dense stores: pad the feature dim to a multiple of 128 (sliced off
    # again at the end).
    Fp = max(128, _round_up(F, 128))
    E_p = E if Fp == F else jnp.pad(E, ((0, 0), (0, Fp - F)))
    pe_p = pe if Fp == F else jnp.pad(pe, ((0, 0), (0, Fp - F)))

    N = B * L
    chunk = _choose_chunk(L)
    quantum = (chunk * 8) // math.gcd(chunk, 8)          # lcm(chunk, 8)

    vmem_cap = _vmem_capacity_bytes()
    tile_rows = _pick_tile_rows(N, quantum, Fp, L, chunk, int(0.5 * vmem_cap))
    n_chunks = tile_rows // chunk
    N_pad = _round_up(N, tile_rows)

    # Hoisted clamp (out-of-range ids map to valid rows instead of faulting;
    # torch nn.Embedding would raise -- valid inputs are unaffected).
    ids = jnp.clip(x_ids.reshape(N).astype(jnp.int32), 0, V - 1)
    if N_pad != N:
        ids = jnp.pad(ids, (0, N_pad - N))

    needed = 4 * Fp * (2 * tile_rows + 2 * L + 2 * chunk) + (1 << 20)
    vmem_limit = int(min(0.85 * vmem_cap, max(2 * needed, 32 << 20)))

    out = pl.pallas_call(
        functools.partial(_embed_gather_kernel, chunk=chunk, seq_len=L,
                          n_chunks=n_chunks),
        out_shape=jax.ShapeDtypeStruct((N_pad, Fp), jnp.float32),
        grid_spec=pltpu.PrefetchScalarGridSpec(
            num_scalar_prefetch=1,
            grid=(N_pad // tile_rows,),
            in_specs=[
                # Embedding table stays in HBM; rows are DMA-gathered.
                pl.BlockSpec(memory_space=pl.ANY),
                # Full positional table resident in VMEM (constant block).
                pl.BlockSpec((maxlen, Fp), lambda i, ids: (0, 0)),
            ],
            out_specs=pl.BlockSpec((tile_rows, Fp), lambda i, ids: (i, 0)),
            scratch_shapes=[
                pltpu.VMEM((2, chunk, Fp), E_p.dtype),
                pltpu.SemaphoreType.DMA((2, chunk)),
            ],
        ),
        compiler_params=pltpu.CompilerParams(
            dimension_semantics=("parallel",),
            vmem_limit_bytes=vmem_limit,
        ),
    )(ids, E_p, pe_p)

    return out[:N, :F].reshape(B, L, F)


def make_positional_encoding(maxlen, n_features):
    """Reproduces the PyTorch buffer `pe` (shape (maxlen, n_features))."""
    num = jnp.arange(maxlen, dtype=jnp.float32)[:, None]
    idx = jnp.arange(n_features)
    even_idx = idx[0::2].astype(jnp.float32)
    odd_idx = (idx[1::2] // 2).astype(jnp.float32)
    even_den = 1.0 / (10000.0 ** (even_idx / n_features))
    odd_den = 1.0 / (10000.0 ** (2.0 * odd_idx / n_features))
    pe = jnp.zeros((maxlen, n_features), jnp.float32)
    pe = pe.at[:, 0::2].set(jnp.sin(num * even_den))
    pe = pe.at[:, 1::2].set(jnp.cos(num * odd_den))
    return pe


if __name__ == "__main__":
    # Small shapes consistent with the module's forward.
    batch = 2
    maxlen = 8          # == sequence length (module asserts L == maxlen)
    n_vocab = 16
    n_features = 32

    key = jax.random.PRNGKey(0)
    k_e, k_x = jax.random.split(key)

    # nn.Embedding default init: N(0, 1).
    E = jax.random.normal(k_e, (n_vocab, n_features), dtype=jnp.float32)
    pe = make_positional_encoding(maxlen, n_features)
    x = jax.random.randint(k_x, (batch, maxlen), 0, n_vocab, dtype=jnp.int32)

    out = embeddings_forward(x, E, pe)
    out = jax.block_until_ready(out)

    # Pure-JAX reference: E(x) + pe[None, :L, :]
    ref = jnp.take(E, x, axis=0) + pe[None, :maxlen, :]
    assert out.shape == (batch, maxlen, n_features)
    assert out.dtype == jnp.float32
    assert jnp.allclose(out, ref, atol=1e-5, rtol=1e-5)

    print("KERNEL_OK")
</pallas_src>

<mosaic_0001>
module attributes {stable_mosaic.version = 11 : i64} {
  func.func @_embed_gather_kernel(%arg0: i32, %arg1: memref<16xi32, #tpu.memory_space<smem>>, %arg2: memref<16x128xf32, #tpu.memory_space<any>>, %arg3: memref<8x128xf32, #tpu.memory_space<vmem>>, %arg4: memref<16x128xf32, #tpu.memory_space<vmem>>, %arg5: memref<2x8x128xf32, #tpu.memory_space<vmem>>, %arg6: memref<2x8x!tpu.dma_semaphore, #tpu.memory_space<semaphore_mem>>) attributes {dimension_semantics = [#tpu.dimension_semantics<parallel>], iteration_bounds = array<i64: 1>, scalar_prefetch = 1 : i64, scratch_operands = 2 : i64, tpu.core_type = #tpu.core_type<tc>, window_params = [{}, {pipeline_mode = #tpu.pipeline_mode<synchronous>, transform_indices = @transform_1, window_bounds = array<i64: 8, 128>}, {transform_indices = @transform_2, window_bounds = array<i64: 16, 128>}]} {
    %c16_i32 = arith.constant 16 : i32
    %0 = arith.muli %arg0, %c16_i32 : i32
    %c0_i32 = arith.constant 0 : i32
    %1 = arith.addi %0, %c0_i32 : i32
    %c0_i32_0 = arith.constant 0 : i32
    %2 = arith.addi %1, %c0_i32_0 : i32
    %3 = arith.index_cast %2 : i32 to index
    %4 = memref.load %arg1[%3] : memref<16xi32, #tpu.memory_space<smem>>
    %c0_i32_1 = arith.constant 0 : i32
    %c0_i32_2 = arith.constant 0 : i32
    %c0_i32_3 = arith.constant 0 : i32
    %c0_i32_4 = arith.constant 0 : i32
    %5 = tpu.memref_slice %arg2[%4, %c0_i32_4] : memref<16x128xf32, #tpu.memory_space<any>> -> memref<1x128xf32, #tpu.memory_space<any>>
    %c0_i32_5 = arith.constant 0 : i32
    %c0_i32_6 = arith.constant 0 : i32
    %6 = tpu.memref_slice %arg5[%c0_i32_1, %c0_i32_5, %c0_i32_6] : memref<2x8x128xf32, #tpu.memory_space<vmem>> -> memref<1x1x128xf32, #tpu.memory_space<vmem>>
    %7 = tpu.memref_squeeze %6 : memref<1x1x128xf32, #tpu.memory_space<vmem>> -> memref<1x128xf32, #tpu.memory_space<vmem>>
    %8 = tpu.memref_slice %arg6[%c0_i32_2, %c0_i32_3] : memref<2x8x!tpu.dma_semaphore, #tpu.memory_space<semaphore_mem>> -> memref<1x1x!tpu.dma_semaphore, #tpu.memory_space<semaphore_mem>>
    %9 = tpu.memref_squeeze %8 : memref<1x1x!tpu.dma_semaphore, #tpu.memory_space<semaphore_mem>> -> memref<!tpu.dma_semaphore, #tpu.memory_space<semaphore_mem>>
    tpu.enqueue_dma source(%5 : memref<1x128xf32, #tpu.memory_space<any>>) target(%7 : memref<1x128xf32, #tpu.memory_space<vmem>>) target_semaphore(%9 : memref<!tpu.dma_semaphore, #tpu.memory_space<semaphore_mem>>)
    %c1_i32 = arith.constant 1 : i32
    %10 = arith.addi %1, %c1_i32 : i32
    %11 = arith.index_cast %10 : i32 to index
    %12 = memref.load %arg1[%11] : memref<16xi32, #tpu.memory_space<smem>>
    %c0_i32_7 = arith.constant 0 : i32
    %c0_i32_8 = arith.constant 0 : i32
    %c1_i32_9 = arith.constant 1 : i32
    %c0_i32_10 = arith.constant 0 : i32
    %13 = tpu.memref_slice %arg2[%12, %c0_i32_10] : memref<16x128xf32, #tpu.memory_space<any>> -> memref<1x128xf32, #tpu.memory_space<any>>
    %c1_i32_11 = arith.constant 1 : i32
    %c0_i32_12 = arith.constant 0 : i32
    %14 = tpu.memref_slice %arg5[%c0_i32_7, %c1_i32_11, %c0_i32_12] : memref<2x8x128xf32, #tpu.memory_space<vmem>> -> memref<1x1x128xf32, #tpu.memory_space<vmem>>
    %15 = tpu.memref_squeeze %14 : memref<1x1x128xf32, #tpu.memory_space<vmem>> -> memref<1x128xf32, #tpu.memory_space<vmem>>
    %16 = tpu.memref_slice %arg6[%c0_i32_8, %c1_i32_9] : memref<2x8x!tpu.dma_semaphore, #tpu.memory_space<semaphore_mem>> -> memref<1x1x!tpu.dma_semaphore, #tpu.memory_space<semaphore_mem>>
    %17 = tpu.memref_squeeze %16 : memref<1x1x!tpu.dma_semaphore, #tpu.memory_space<semaphore_mem>> -> memref<!tpu.dma_semaphore, #tpu.memory_space<semaphore_mem>>
    tpu.enqueue_dma source(%13 : memref<1x128xf32, #tpu.memory_space<any>>) target(%15 : memref<1x128xf32, #tpu.memory_space<vmem>>) target_semaphore(%17 : memref<!tpu.dma_semaphore, #tpu.memory_space<semaphore_mem>>)
    %c2_i32 = arith.constant 2 : i32
    %18 = arith.addi %1, %c2_i32 : i32
    %19 = arith.index_cast %18 : i32 to index
    %20 = memref.load %arg1[%19] : memref<16xi32, #tpu.memory_space<smem>>
    %c0_i32_13 = arith.constant 0 : i32
    %c0_i32_14 = arith.constant 0 : i32
    %c2_i32_15 = arith.constant 2 : i32
    %c0_i32_16 = arith.constant 0 : i32
    %21 = tpu.memref_slice %arg2[%20, %c0_i32_16] : memref<16x128xf32, #tpu.memory_space<any>> -> memref<1x128xf32, #tpu.memory_space<any>>
    %c2_i32_17 = arith.constant 2 : i32
    %c0_i32_18 = arith.constant 0 : i32
    %22 = tpu.memref_slice %arg5[%c0_i32_13, %c2_i32_17, %c0_i32_18] : memref<2x8x128xf32, #tpu.memory_space<vmem>> -> memref<1x1x128xf32, #tpu.memory_space<vmem>>
    %23 = tpu.memref_squeeze %22 : memref<1x1x128xf32, #tpu.memory_space<vmem>> -> memref<1x128xf32, #tpu.memory_space<vmem>>
    %24 = tpu.memref_slice %arg6[%c0_i32_14, %c2_i32_15] : memref<2x8x!tpu.dma_semaphore, #tpu.memory_space<semaphore_mem>> -> memref<1x1x!tpu.dma_semaphore, #tpu.memory_space<semaphore_mem>>
    %25 = tpu.memref_squeeze %24 : memref<1x1x!tpu.dma_semaphore, #tpu.memory_space<semaphore_mem>> -> memref<!tpu.dma_semaphore, #tpu.memory_space<semaphore_mem>>
    tpu.enqueue_dma source(%21 : memref<1x128xf32, #tpu.memory_space<any>>) target(%23 : memref<1x128xf32, #tpu.memory_space<vmem>>) target_semaphore(%25 : memref<!tpu.dma_semaphore, #tpu.memory_space<semaphore_mem>>)
    %c3_i32 = arith.constant 3 : i32
    %26 = arith.addi %1, %c3_i32 : i32
    %27 = arith.index_cast %26 : i32 to index
    %28 = memref.load %arg1[%27] : memref<16xi32, #tpu.memory_space<smem>>
    %c0_i32_19 = arith.constant 0 : i32
    %c0_i32_20 = arith.constant 0 : i32
    %c3_i32_21 = arith.constant 3 : i32
    %c0_i32_22 = arith.constant 0 : i32
    %29 = tpu.memref_slice %arg2[%28, %c0_i32_22] : memref<16x128xf32, #tpu.memory_space<any>> -> memref<1x128xf32, #tpu.memory_space<any>>
    %c3_i32_23 = arith.constant 3 : i32
    %c0_i32_24 = arith.constant 0 : i32
    %30 = tpu.memref_slice %arg5[%c0_i32_19, %c3_i32_23, %c0_i32_24] : memref<2x8x128xf32, #tpu.memory_space<vmem>> -> memref<1x1x128xf32, #tpu.memory_space<vmem>>
    %31 = tpu.memref_squeeze %30 : memref<1x1x128xf32, #tpu.memory_space<vmem>> -> memref<1x128xf32, #tpu.memory_space<vmem>>
    %32 = tpu.memref_slice %arg6[%c0_i32_20, %c3_i32_21] : memref<2x8x!tpu.dma_semaphore, #tpu.memory_space<semaphore_mem>> -> memref<1x1x!tpu.dma_semaphore, #tpu.memory_space<semaphore_mem>>
    %33 = tpu.memref_squeeze %32 : memref<1x1x!tpu.dma_semaphore, #tpu.memory_space<semaphore_mem>> -> memref<!tpu.dma_semaphore, #tpu.memory_space<semaphore_mem>>
    tpu.enqueue_dma source(%29 : memref<1x128xf32, #tpu.memory_space<any>>) target(%31 : memref<1x128xf32, #tpu.memory_space<vmem>>) target_semaphore(%33 : memref<!tpu.dma_semaphore, #tpu.memory_space<semaphore_mem>>)
    %c4_i32 = arith.constant 4 : i32
    %34 = arith.addi %1, %c4_i32 : i32
    %35 = arith.index_cast %34 : i32 to index
    %36 = memref.load %arg1[%35] : memref<16xi32, #tpu.memory_space<smem>>
    %c0_i32_25 = arith.constant 0 : i32
    %c0_i32_26 = arith.constant 0 : i32
    %c4_i32_27 = arith.constant 4 : i32
    %c0_i32_28 = arith.constant 0 : i32
    %37 = tpu.memref_slice %arg2[%36, %c0_i32_28] : memref<16x128xf32, #tpu.memory_space<any>> -> memref<1x128xf32, #tpu.memory_space<any>>
    %c4_i32_29 = arith.constant 4 : i32
    %c0_i32_30 = arith.constant 0 : i32
    %38 = tpu.memref_slice %arg5[%c0_i32_25, %c4_i32_29, %c0_i32_30] : memref<2x8x128xf32, #tpu.memory_space<vmem>> -> memref<1x1x128xf32, #tpu.memory_space<vmem>>
    %39 = tpu.memref_squeeze %38 : memref<1x1x128xf32, #tpu.memory_space<vmem>> -> memref<1x128xf32, #tpu.memory_space<vmem>>
    %40 = tpu.memref_slice %arg6[%c0_i32_26, %c4_i32_27] : memref<2x8x!tpu.dma_semaphore, #tpu.memory_space<semaphore_mem>> -> memref<1x1x!tpu.dma_semaphore, #tpu.memory_space<semaphore_mem>>
    %41 = tpu.memref_squeeze %40 : memref<1x1x!tpu.dma_semaphore, #tpu.memory_space<semaphore_mem>> -> memref<!tpu.dma_semaphore, #tpu.memory_space<semaphore_mem>>
    tpu.enqueue_dma source(%37 : memref<1x128xf32, #tpu.memory_space<any>>) target(%39 : memref<1x128xf32, #tpu.memory_space<vmem>>) target_semaphore(%41 : memref<!tpu.dma_semaphore, #tpu.memory_space<semaphore_mem>>)
    %c5_i32 = arith.constant 5 : i32
    %42 = arith.addi %1, %c5_i32 : i32
    %43 = arith.index_cast %42 : i32 to index
    %44 = memref.load %arg1[%43] : memref<16xi32, #tpu.memory_space<smem>>
    %c0_i32_31 = arith.constant 0 : i32
    %c0_i32_32 = arith.constant 0 : i32
    %c5_i32_33 = arith.constant 5 : i32
    %c0_i32_34 = arith.constant 0 : i32
    %45 = tpu.memref_slice %arg2[%44, %c0_i32_34] : memref<16x128xf32, #tpu.memory_space<any>> -> memref<1x128xf32, #tpu.memory_space<any>>
    %c5_i32_35 = arith.constant 5 : i32
    %c0_i32_36 = arith.constant 0 : i32
    %46 = tpu.memref_slice %arg5[%c0_i32_31, %c5_i32_35, %c0_i32_36] : memref<2x8x128xf32, #tpu.memory_space<vmem>> -> memref<1x1x128xf32, #tpu.memory_space<vmem>>
    %47 = tpu.memref_squeeze %46 : memref<1x1x128xf32, #tpu.memory_space<vmem>> -> memref<1x128xf32, #tpu.memory_space<vmem>>
    %48 = tpu.memref_slice %arg6[%c0_i32_32, %c5_i32_33] : memref<2x8x!tpu.dma_semaphore, #tpu.memory_space<semaphore_mem>> -> memref<1x1x!tpu.dma_semaphore, #tpu.memory_space<semaphore_mem>>
    %49 = tpu.memref_squeeze %48 : memref<1x1x!tpu.dma_semaphore, #tpu.memory_space<semaphore_mem>> -> memref<!tpu.dma_semaphore, #tpu.memory_space<semaphore_mem>>
    tpu.enqueue_dma source(%45 : memref<1x128xf32, #tpu.memory_space<any>>) target(%47 : memref<1x128xf32, #tpu.memory_space<vmem>>) target_semaphore(%49 : memref<!tpu.dma_semaphore, #tpu.memory_space<semaphore_mem>>)
    %c6_i32 = arith.constant 6 : i32
    %50 = arith.addi %1, %c6_i32 : i32
    %51 = arith.index_cast %50 : i32 to index
    %52 = memref.load %arg1[%51] : memref<16xi32, #tpu.memory_space<smem>>
    %c0_i32_37 = arith.constant 0 : i32
    %c0_i32_38 = arith.constant 0 : i32
    %c6_i32_39 = arith.constant 6 : i32
    %c0_i32_40 = arith.constant 0 : i32
    %53 = tpu.memref_slice %arg2[%52, %c0_i32_40] : memref<16x128xf32, #tpu.memory_space<any>> -> memref<1x128xf32, #tpu.memory_space<any>>
    %c6_i32_41 = arith.constant 6 : i32
    %c0_i32_42 = arith.constant 0 : i32
    %54 = tpu.memref_slice %arg5[%c0_i32_37, %c6_i32_41, %c0_i32_42] : memref<2x8x128xf32, #tpu.memory_space<vmem>> -> memref<1x1x128xf32, #tpu.memory_space<vmem>>
    %55 = tpu.memref_squeeze %54 : memref<1x1x128xf32, #tpu.memory_space<vmem>> -> memref<1x128xf32, #tpu.memory_space<vmem>>
    %56 = tpu.memref_slice %arg6[%c0_i32_38, %c6_i32_39] : memref<2x8x!tpu.dma_semaphore, #tpu.memory_space<semaphore_mem>> -> memref<1x1x!tpu.dma_semaphore, #tpu.memory_space<semaphore_mem>>
    %57 = tpu.memref_squeeze %56 : memref<1x1x!tpu.dma_semaphore, #tpu.memory_space<semaphore_mem>> -> memref<!tpu.dma_semaphore, #tpu.memory_space<semaphore_mem>>
    tpu.enqueue_dma source(%53 : memref<1x128xf32, #tpu.memory_space<any>>) target(%55 : memref<1x128xf32, #tpu.memory_space<vmem>>) target_semaphore(%57 : memref<!tpu.dma_semaphore, #tpu.memory_space<semaphore_mem>>)
    %c7_i32 = arith.constant 7 : i32
    %58 = arith.addi %1, %c7_i32 : i32
    %59 = arith.index_cast %58 : i32 to index
    %60 = memref.load %arg1[%59] : memref<16xi32, #tpu.memory_space<smem>>
    %c0_i32_43 = arith.constant 0 : i32
    %c0_i32_44 = arith.constant 0 : i32
    %c7_i32_45 = arith.constant 7 : i32
    %c0_i32_46 = arith.constant 0 : i32
    %61 = tpu.memref_slice %arg2[%60, %c0_i32_46] : memref<16x128xf32, #tpu.memory_space<any>> -> memref<1x128xf32, #tpu.memory_space<any>>
    %c7_i32_47 = arith.constant 7 : i32
    %c0_i32_48 = arith.constant 0 : i32
    %62 = tpu.memref_slice %arg5[%c0_i32_43, %c7_i32_47, %c0_i32_48] : memref<2x8x128xf32, #tpu.memory_space<vmem>> -> memref<1x1x128xf32, #tpu.memory_space<vmem>>
    %63 = tpu.memref_squeeze %62 : memref<1x1x128xf32, #tpu.memory_space<vmem>> -> memref<1x128xf32, #tpu.memory_space<vmem>>
    %64 = tpu.memref_slice %arg6[%c0_i32_44, %c7_i32_45] : memref<2x8x!tpu.dma_semaphore, #tpu.memory_space<semaphore_mem>> -> memref<1x1x!tpu.dma_semaphore, #tpu.memory_space<semaphore_mem>>
    %65 = tpu.memref_squeeze %64 : memref<1x1x!tpu.dma_semaphore, #tpu.memory_space<semaphore_mem>> -> memref<!tpu.dma_semaphore, #tpu.memory_space<semaphore_mem>>
    tpu.enqueue_dma source(%61 : memref<1x128xf32, #tpu.memory_space<any>>) target(%63 : memref<1x128xf32, #tpu.memory_space<vmem>>) target_semaphore(%65 : memref<!tpu.dma_semaphore, #tpu.memory_space<semaphore_mem>>)
    %c0_i32_49 = arith.constant 0 : i32
    %c2_i32_50 = arith.constant 2 : i32
    %c0_i32_51 = arith.constant 0 : i32
    %66 = arith.cmpi eq, %c2_i32_50, %c0_i32_51 : i32
    %c1_i32_52 = arith.constant 1 : i32
    %67 = arith.select %66, %c1_i32_52, %c2_i32_50 : i32
    %68 = arith.remsi %c0_i32_49, %67 : i32
    %c0_i32_53 = arith.constant 0 : i32
    %69 = arith.cmpi ne, %68, %c0_i32_53 : i32
    %c0_i32_54 = arith.constant 0 : i32
    %70 = arith.cmpi slt, %68, %c0_i32_54 : i32
    %c0_i32_55 = arith.constant 0 : i32
    %71 = arith.cmpi slt, %67, %c0_i32_55 : i32
    %72 = arith.xori %70, %71 : i1
    %73 = arith.andi %72, %69 : i1
    %74 = arith.addi %68, %67 : i32
    %75 = arith.select %73, %74, %68 : i32
    %c1_i32_56 = arith.constant 1 : i32
    %76 = arith.addi %c0_i32_49, %c1_i32_56 : i32
    %c2_i32_57 = arith.constant 2 : i32
    %77 = arith.cmpi slt, %76, %c2_i32_57 : i32
    %78 = arith.extui %77 : i1 to i32
    %c0_i32_58 = arith.constant 0 : i32
    %79 = arith.cmpi ne, %78, %c0_i32_58 : i32
    scf.if %79 {
      %c1_i32_170 = arith.constant 1 : i32
      %218 = arith.addi %c0_i32_49, %c1_i32_170 : i32
      %c1_i32_171 = arith.constant 1 : i32
      %219 = arith.subi %c1_i32_171, %75 : i32
      %c8_i32_172 = arith.constant 8 : i32
      %220 = arith.muli %218, %c8_i32_172 : i32
      %221 = arith.addi %0, %220 : i32
      %c0_i32_173 = arith.constant 0 : i32
      %222 = arith.addi %221, %c0_i32_173 : i32
      %223 = arith.index_cast %222 : i32 to index
      %224 = memref.load %arg1[%223] : memref<16xi32, #tpu.memory_space<smem>>
      %c0_i32_174 = arith.constant 0 : i32
      %c0_i32_175 = arith.constant 0 : i32
      %225 = tpu.memref_slice %arg2[%224, %c0_i32_175] : memref<16x128xf32, #tpu.memory_space<any>> -> memref<1x128xf32, #tpu.memory_space<any>>
      %c0_i32_176 = arith.constant 0 : i32
      %c0_i32_177 = arith.constant 0 : i32
      %226 = tpu.memref_slice %arg5[%219, %c0_i32_176, %c0_i32_177] : memref<2x8x128xf32, #tpu.memory_space<vmem>> -> memref<1x1x128xf32, #tpu.memory_space<vmem>>
      %227 = tpu.memref_squeeze %226 : memref<1x1x128xf32, #tpu.memory_space<vmem>> -> memref<1x128xf32, #tpu.memory_space<vmem>>
      %228 = tpu.memref_slice %arg6[%219, %c0_i32_174] : memref<2x8x!tpu.dma_semaphore, #tpu.memory_space<semaphore_mem>> -> memref<1x1x!tpu.dma_semaphore, #tpu.memory_space<semaphore_mem>>
      %229 = tpu.memref_squeeze %228 : memref<1x1x!tpu.dma_semaphore, #tpu.memory_space<semaphore_mem>> -> memref<!tpu.dma_semaphore, #tpu.memory_space<semaphore_mem>>
      tpu.enqueue_dma source(%225 : memref<1x128xf32, #tpu.memory_space<any>>) target(%227 : memref<1x128xf32, #tpu.memory_space<vmem>>) target_semaphore(%229 : memref<!tpu.dma_semaphore, #tpu.memory_space<semaphore_mem>>)
      %c1_i32_178 = arith.constant 1 : i32
      %230 = arith.addi %221, %c1_i32_178 : i32
      %231 = arith.index_cast %230 : i32 to index
      %232 = memref.load %arg1[%231] : memref<16xi32, #tpu.memory_space<smem>>
      %c1_i32_179 = arith.constant 1 : i32
      %c0_i32_180 = arith.constant 0 : i32
      %233 = tpu.memref_slice %arg2[%232, %c0_i32_180] : memref<16x128xf32, #tpu.memory_space<any>> -> memref<1x128xf32, #tpu.memory_space<any>>
      %c1_i32_181 = arith.constant 1 : i32
      %c0_i32_182 = arith.constant 0 : i32
      %234 = tpu.memref_slice %arg5[%219, %c1_i32_181, %c0_i32_182] : memref<2x8x128xf32, #tpu.memory_space<vmem>> -> memref<1x1x128xf32, #tpu.memory_space<vmem>>
      %235 = tpu.memref_squeeze %234 : memref<1x1x128xf32, #tpu.memory_space<vmem>> -> memref<1x128xf32, #tpu.memory_space<vmem>>
      %236 = tpu.memref_slice %arg6[%219, %c1_i32_179] : memref<2x8x!tpu.dma_semaphore, #tpu.memory_space<semaphore_mem>> -> memref<1x1x!tpu.dma_semaphore, #tpu.memory_space<semaphore_mem>>
      %237 = tpu.memref_squeeze %236 : memref<1x1x!tpu.dma_semaphore, #tpu.memory_space<semaphore_mem>> -> memref<!tpu.dma_semaphore, #tpu.memory_space<semaphore_mem>>
      tpu.enqueue_dma source(%233 : memref<1x128xf32, #tpu.memory_space<any>>) target(%235 : memref<1x128xf32, #tpu.memory_space<vmem>>) target_semaphore(%237 : memref<!tpu.dma_semaphore, #tpu.memory_space<semaphore_mem>>)
      %c2_i32_183 = arith.constant 2 : i32
      %238 = arith.addi %221, %c2_i32_183 : i32
      %239 = arith.index_cast %238 : i32 to index
      %240 = memref.load %arg1[%239] : memref<16xi32, #tpu.memory_space<smem>>
      %c2_i32_184 = arith.constant 2 : i32
      %c0_i32_185 = arith.constant 0 : i32
      %241 = tpu.memref_slice %arg2[%240, %c0_i32_185] : memref<16x128xf32, #tpu.memory_space<any>> -> memref<1x128xf32, #tpu.memory_space<any>>
      %c2_i32_186 = arith.constant 2 : i32
      %c0_i32_187 = arith.constant 0 : i32
      %242 = tpu.memref_slice %arg5[%219, %c2_i32_186, %c0_i32_187] : memref<2x8x128xf32, #tpu.memory_space<vmem>> -> memref<1x1x128xf32, #tpu.memory_space<vmem>>
      %243 = tpu.memref_squeeze %242 : memref<1x1x128xf32, #tpu.memory_space<vmem>> -> memref<1x128xf32, #tpu.memory_space<vmem>>
      %244 = tpu.memref_slice %arg6[%219, %c2_i32_184] : memref<2x8x!tpu.dma_semaphore, #tpu.memory_space<semaphore_mem>> -> memref<1x1x!tpu.dma_semaphore, #tpu.memory_space<semaphore_mem>>
      %245 = tpu.memref_squeeze %244 : memref<1x1x!tpu.dma_semaphore, #tpu.memory_space<semaphore_mem>> -> memref<!tpu.dma_semaphore, #tpu.memory_space<semaphore_mem>>
      tpu.enqueue_dma source(%241 : memref<1x128xf32, #tpu.memory_space<any>>) target(%243 : memref<1x128xf32, #tpu.memory_space<vmem>>) target_semaphore(%245 : memref<!tpu.dma_semaphore, #tpu.memory_space<semaphore_mem>>)
      %c3_i32_188 = arith.constant 3 : i32
      %246 = arith.addi %221, %c3_i32_188 : i32
      %247 = arith.index_cast %246 : i32 to index
      %248 = memref.load %arg1[%247] : memref<16xi32, #tpu.memory_space<smem>>
      %c3_i32_189 = arith.constant 3 : i32
      %c0_i32_190 = arith.constant 0 : i32
      %249 = tpu.memref_slice %arg2[%248, %c0_i32_190] : memref<16x128xf32, #tpu.memory_space<any>> -> memref<1x128xf32, #tpu.memory_space<any>>
      %c3_i32_191 = arith.constant 3 : i32
      %c0_i32_192 = arith.constant 0 : i32
      %250 = tpu.memref_slice %arg5[%219, %c3_i32_191, %c0_i32_192] : memref<2x8x128xf32, #tpu.memory_space<vmem>> -> memref<1x1x128xf32, #tpu.memory_space<vmem>>
      %251 = tpu.memref_squeeze %250 : memref<1x1x128xf32, #tpu.memory_space<vmem>> -> memref<1x128xf32, #tpu.memory_space<vmem>>
      %252 = tpu.memref_slice %arg6[%219, %c3_i32_189] : memref<2x8x!tpu.dma_semaphore, #tpu.memory_space<semaphore_mem>> -> memref<1x1x!tpu.dma_semaphore, #tpu.memory_space<semaphore_mem>>
      %253 = tpu.memref_squeeze %252 : memref<1x1x!tpu.dma_semaphore, #tpu.memory_space<semaphore_mem>> -> memref<!tpu.dma_semaphore, #tpu.memory_space<semaphore_mem>>
      tpu.enqueue_dma source(%249 : memref<1x128xf32, #tpu.memory_space<any>>) target(%251 : memref<1x128xf32, #tpu.memory_space<vmem>>) target_semaphore(%253 : memref<!tpu.dma_semaphore, #tpu.memory_space<semaphore_mem>>)
      %c4_i32_193 = arith.constant 4 : i32
      %254 = arith.addi %221, %c4_i32_193 : i32
      %255 = arith.index_cast %254 : i32 to index
      %256 = memref.load %arg1[%255] : memref<16xi32, #tpu.memory_space<smem>>
      %c4_i32_194 = arith.constant 4 : i32
      %c0_i32_195 = arith.constant 0 : i32
      %257 = tpu.memref_slice %arg2[%256, %c0_i32_195] : memref<16x128xf32, #tpu.memory_space<any>> -> memref<1x128xf32, #tpu.memory_space<any>>
      %c4_i32_196 = arith.constant 4 : i32
      %c0_i32_197 = arith.constant 0 : i32
      %258 = tpu.memref_slice %arg5[%219, %c4_i32_196, %c0_i32_197] : memref<2x8x128xf32, #tpu.memory_space<vmem>> -> memref<1x1x128xf32, #tpu.memory_space<vmem>>
      %259 = tpu.memref_squeeze %258 : memref<1x1x128xf32, #tpu.memory_space<vmem>> -> memref<1x128xf32, #tpu.memory_space<vmem>>
      %260 = tpu.memref_slice %arg6[%219, %c4_i32_194] : memref<2x8x!tpu.dma_semaphore, #tpu.memory_space<semaphore_mem>> -> memref<1x1x!tpu.dma_semaphore, #tpu.memory_space<semaphore_mem>>
      %261 = tpu.memref_squeeze %260 : memref<1x1x!tpu.dma_semaphore, #tpu.memory_space<semaphore_mem>> -> memref<!tpu.dma_semaphore, #tpu.memory_space<semaphore_mem>>
      tpu.enqueue_dma source(%257 : memref<1x128xf32, #tpu.memory_space<any>>) target(%259 : memref<1x128xf32, #tpu.memory_space<vmem>>) target_semaphore(%261 : memref<!tpu.dma_semaphore, #tpu.memory_space<semaphore_mem>>)
      %c5_i32_198 = arith.constant 5 : i32
      %262 = arith.addi %221, %c5_i32_198 : i32
      %263 = arith.index_cast %262 : i32 to index
      %264 = memref.load %arg1[%263] : memref<16xi32, #tpu.memory_space<smem>>
      %c5_i32_199 = arith.constant 5 : i32
      %c0_i32_200 = arith.constant 0 : i32
      %265 = tpu.memref_slice %arg2[%264, %c0_i32_200] : memref<16x128xf32, #tpu.memory_space<any>> -> memref<1x128xf32, #tpu.memory_space<any>>
      %c5_i32_201 = arith.constant 5 : i32
      %c0_i32_202 = arith.constant 0 : i32
      %266 = tpu.memref_slice %arg5[%219, %c5_i32_201, %c0_i32_202] : memref<2x8x128xf32, #tpu.memory_space<vmem>> -> memref<1x1x128xf32, #tpu.memory_space<vmem>>
      %267 = tpu.memref_squeeze %266 : memref<1x1x128xf32, #tpu.memory_space<vmem>> -> memref<1x128xf32, #tpu.memory_space<vmem>>
      %268 = tpu.memref_slice %arg6[%219, %c5_i32_199] : memref<2x8x!tpu.dma_semaphore, #tpu.memory_space<semaphore_mem>> -> memref<1x1x!tpu.dma_semaphore, #tpu.memory_space<semaphore_mem>>
      %269 = tpu.memref_squeeze %268 : memref<1x1x!tpu.dma_semaphore, #tpu.memory_space<semaphore_mem>> -> memref<!tpu.dma_semaphore, #tpu.memory_space<semaphore_mem>>
      tpu.enqueue_dma source(%265 : memref<1x128xf32, #tpu.memory_space<any>>) target(%267 : memref<1x128xf32, #tpu.memory_space<vmem>>) target_semaphore(%269 : memref<!tpu.dma_semaphore, #tpu.memory_space<semaphore_mem>>)
      %c6_i32_203 = arith.constant 6 : i32
      %270 = arith.addi %221, %c6_i32_203 : i32
      %271 = arith.index_cast %270 : i32 to index
      %272 = memref.load %arg1[%271] : memref<16xi32, #tpu.memory_space<smem>>
      %c6_i32_204 = arith.constant 6 : i32
      %c0_i32_205 = arith.constant 0 : i32
      %273 = tpu.memref_slice %arg2[%272, %c0_i32_205] : memref<16x128xf32, #tpu.memory_space<any>> -> memref<1x128xf32, #tpu.memory_space<any>>
      %c6_i32_206 = arith.constant 6 : i32
      %c0_i32_207 = arith.constant 0 : i32
      %274 = tpu.memref_slice %arg5[%219, %c6_i32_206, %c0_i32_207] : memref<2x8x128xf32, #tpu.memory_space<vmem>> -> memref<1x1x128xf32, #tpu.memory_space<vmem>>
      %275 = tpu.memref_squeeze %274 : memref<1x1x128xf32, #tpu.memory_space<vmem>> -> memref<1x128xf32, #tpu.memory_space<vmem>>
      %276 = tpu.memref_slice %arg6[%219, %c6_i32_204] : memref<2x8x!tpu.dma_semaphore, #tpu.memory_space<semaphore_mem>> -> memref<1x1x!tpu.dma_semaphore, #tpu.memory_space<semaphore_mem>>
      %277 = tpu.memref_squeeze %276 : memref<1x1x!tpu.dma_semaphore, #tpu.memory_space<semaphore_mem>> -> memref<!tpu.dma_semaphore, #tpu.memory_space<semaphore_mem>>
      tpu.enqueue_dma source(%273 : memref<1x128xf32, #tpu.memory_space<any>>) target(%275 : memref<1x128xf32, #tpu.memory_space<vmem>>) target_semaphore(%277 : memref<!tpu.dma_semaphore, #tpu.memory_space<semaphore_mem>>)
      %c7_i32_208 = arith.constant 7 : i32
      %278 = arith.addi %221, %c7_i32_208 : i32
      %279 = arith.index_cast %278 : i32 to index
      %280 = memref.load %arg1[%279] : memref<16xi32, #tpu.memory_space<smem>>
      %c7_i32_209 = arith.constant 7 : i32
      %c0_i32_210 = arith.constant 0 : i32
      %281 = tpu.memref_slice %arg2[%280, %c0_i32_210] : memref<16x128xf32, #tpu.memory_space<any>> -> memref<1x128xf32, #tpu.memory_space<any>>
      %c7_i32_211 = arith.constant 7 : i32
      %c0_i32_212 = arith.constant 0 : i32
      %282 = tpu.memref_slice %arg5[%219, %c7_i32_211, %c0_i32_212] : memref<2x8x128xf32, #tpu.memory_space<vmem>> -> memref<1x1x128xf32, #tpu.memory_space<vmem>>
      %283 = tpu.memref_squeeze %282 : memref<1x1x128xf32, #tpu.memory_space<vmem>> -> memref<1x128xf32, #tpu.memory_space<vmem>>
      %284 = tpu.memref_slice %arg6[%219, %c7_i32_209] : memref<2x8x!tpu.dma_semaphore, #tpu.memory_space<semaphore_mem>> -> memref<1x1x!tpu.dma_semaphore, #tpu.memory_space<semaphore_mem>>
      %285 = tpu.memref_squeeze %284 : memref<1x1x!tpu.dma_semaphore, #tpu.memory_space<semaphore_mem>> -> memref<!tpu.dma_semaphore, #tpu.memory_space<semaphore_mem>>
      tpu.enqueue_dma source(%281 : memref<1x128xf32, #tpu.memory_space<any>>) target(%283 : memref<1x128xf32, #tpu.memory_space<vmem>>) target_semaphore(%285 : memref<!tpu.dma_semaphore, #tpu.memory_space<semaphore_mem>>)
    } else {
    }
    %c0_i32_59 = arith.constant 0 : i32
    %c0_i32_60 = arith.constant 0 : i32
    %c0_i32_61 = arith.constant 0 : i32
    %80 = tpu.memref_slice %arg2[%c0_i32_60, %c0_i32_61] : memref<16x128xf32, #tpu.memory_space<any>> -> memref<1x128xf32, #tpu.memory_space<any>>
    %c0_i32_62 = arith.constant 0 : i32
    %c0_i32_63 = arith.constant 0 : i32
    %81 = tpu.memref_slice %arg5[%75, %c0_i32_62, %c0_i32_63] : memref<2x8x128xf32, #tpu.memory_space<vmem>> -> memref<1x1x128xf32, #tpu.memory_space<vmem>>
    %82 = tpu.memref_squeeze %81 : memref<1x1x128xf32, #tpu.memory_space<vmem>> -> memref<1x128xf32, #tpu.memory_space<vmem>>
    %83 = tpu.memref_slice %arg6[%75, %c0_i32_59] : memref<2x8x!tpu.dma_semaphore, #tpu.memory_space<semaphore_mem>> -> memref<1x1x!tpu.dma_semaphore, #tpu.memory_space<semaphore_mem>>
    %84 = tpu.memref_squeeze %83 : memref<1x1x!tpu.dma_semaphore, #tpu.memory_space<semaphore_mem>> -> memref<!tpu.dma_semaphore, #tpu.memory_space<semaphore_mem>>
    tpu.wait_dma2 semaphore(%84 : memref<!tpu.dma_semaphore, #tpu.memory_space<semaphore_mem>>) src(%80 : memref<1x128xf32, #tpu.memory_space<any>>) dst(%82 : memref<1x128xf32, #tpu.memory_space<vmem>>)
    %c1_i32_64 = arith.constant 1 : i32
    %c0_i32_65 = arith.constant 0 : i32
    %c0_i32_66 = arith.constant 0 : i32
    %85 = tpu.memref_slice %arg2[%c0_i32_65, %c0_i32_66] : memref<16x128xf32, #tpu.memory_space<any>> -> memref<1x128xf32, #tpu.memory_space<any>>
    %c1_i32_67 = arith.constant 1 : i32
    %c0_i32_68 = arith.constant 0 : i32
    %86 = tpu.memref_slice %arg5[%75, %c1_i32_67, %c0_i32_68] : memref<2x8x128xf32, #tpu.memory_space<vmem>> -> memref<1x1x128xf32, #tpu.memory_space<vmem>>
    %87 = tpu.memref_squeeze %86 : memref<1x1x128xf32, #tpu.memory_space<vmem>> -> memref<1x128xf32, #tpu.memory_space<vmem>>
    %88 = tpu.memref_slice %arg6[%75, %c1_i32_64] : memref<2x8x!tpu.dma_semaphore, #tpu.memory_space<semaphore_mem>> -> memref<1x1x!tpu.dma_semaphore, #tpu.memory_space<semaphore_mem>>
    %89 = tpu.memref_squeeze %88 : memref<1x1x!tpu.dma_semaphore, #tpu.memory_space<semaphore_mem>> -> memref<!tpu.dma_semaphore, #tpu.memory_space<semaphore_mem>>
    tpu.wait_dma2 semaphore(%89 : memref<!tpu.dma_semaphore, #tpu.memory_space<semaphore_mem>>) src(%85 : memref<1x128xf32, #tpu.memory_space<any>>) dst(%87 : memref<1x128xf32, #tpu.memory_space<vmem>>)
    %c2_i32_69 = arith.constant 2 : i32
    %c0_i32_70 = arith.constant 0 : i32
    %c0_i32_71 = arith.constant 0 : i32
    %90 = tpu.memref_slice %arg2[%c0_i32_70, %c0_i32_71] : memref<16x128xf32, #tpu.memory_space<any>> -> memref<1x128xf32, #tpu.memory_space<any>>
    %c2_i32_72 = arith.constant 2 : i32
    %c0_i32_73 = arith.constant 0 : i32
    %91 = tpu.memref_slice %arg5[%75, %c2_i32_72, %c0_i32_73] : memref<2x8x128xf32, #tpu.memory_space<vmem>> -> memref<1x1x128xf32, #tpu.memory_space<vmem>>
    %92 = tpu.memref_squeeze %91 : memref<1x1x128xf32, #tpu.memory_space<vmem>> -> memref<1x128xf32, #tpu.memory_space<vmem>>
    %93 = tpu.memref_slice %arg6[%75, %c2_i32_69] : memref<2x8x!tpu.dma_semaphore, #tpu.memory_space<semaphore_mem>> -> memref<1x1x!tpu.dma_semaphore, #tpu.memory_space<semaphore_mem>>
    %94 = tpu.memref_squeeze %93 : memref<1x1x!tpu.dma_semaphore, #tpu.memory_space<semaphore_mem>> -> memref<!tpu.dma_semaphore, #tpu.memory_space<semaphore_mem>>
    tpu.wait_dma2 semaphore(%94 : memref<!tpu.dma_semaphore, #tpu.memory_space<semaphore_mem>>) src(%90 : memref<1x128xf32, #tpu.memory_space<any>>) dst(%92 : memref<1x128xf32, #tpu.memory_space<vmem>>)
    %c3_i32_74 = arith.constant 3 : i32
    %c0_i32_75 = arith.constant 0 : i32
    %c0_i32_76 = arith.constant 0 : i32
    %95 = tpu.memref_slice %arg2[%c0_i32_75, %c0_i32_76] : memref<16x128xf32, #tpu.memory_space<any>> -> memref<1x128xf32, #tpu.memory_space<any>>
    %c3_i32_77 = arith.constant 3 : i32
    %c0_i32_78 = arith.constant 0 : i32
    %96 = tpu.memref_slice %arg5[%75, %c3_i32_77, %c0_i32_78] : memref<2x8x128xf32, #tpu.memory_space<vmem>> -> memref<1x1x128xf32, #tpu.memory_space<vmem>>
    %97 = tpu.memref_squeeze %96 : memref<1x1x128xf32, #tpu.memory_space<vmem>> -> memref<1x128xf32, #tpu.memory_space<vmem>>
    %98 = tpu.memref_slice %arg6[%75, %c3_i32_74] : memref<2x8x!tpu.dma_semaphore, #tpu.memory_space<semaphore_mem>> -> memref<1x1x!tpu.dma_semaphore, #tpu.memory_space<semaphore_mem>>
    %99 = tpu.memref_squeeze %98 : memref<1x1x!tpu.dma_semaphore, #tpu.memory_space<semaphore_mem>> -> memref<!tpu.dma_semaphore, #tpu.memory_space<semaphore_mem>>
    tpu.wait_dma2 semaphore(%99 : memref<!tpu.dma_semaphore, #tpu.memory_space<semaphore_mem>>) src(%95 : memref<1x128xf32, #tpu.memory_space<any>>) dst(%97 : memref<1x128xf32, #tpu.memory_space<vmem>>)
    %c4_i32_79 = arith.constant 4 : i32
    %c0_i32_80 = arith.constant 0 : i32
    %c0_i32_81 = arith.constant 0 : i32
    %100 = tpu.memref_slice %arg2[%c0_i32_80, %c0_i32_81] : memref<16x128xf32, #tpu.memory_space<any>> -> memref<1x128xf32, #tpu.memory_space<any>>
    %c4_i32_82 = arith.constant 4 : i32
    %c0_i32_83 = arith.constant 0 : i32
    %101 = tpu.memref_slice %arg5[%75, %c4_i32_82, %c0_i32_83] : memref<2x8x128xf32, #tpu.memory_space<vmem>> -> memref<1x1x128xf32, #tpu.memory_space<vmem>>
    %102 = tpu.memref_squeeze %101 : memref<1x1x128xf32, #tpu.memory_space<vmem>> -> memref<1x128xf32, #tpu.memory_space<vmem>>
    %103 = tpu.memref_slice %arg6[%75, %c4_i32_79] : memref<2x8x!tpu.dma_semaphore, #tpu.memory_space<semaphore_mem>> -> memref<1x1x!tpu.dma_semaphore, #tpu.memory_space<semaphore_mem>>
    %104 = tpu.memref_squeeze %103 : memref<1x1x!tpu.dma_semaphore, #tpu.memory_space<semaphore_mem>> -> memref<!tpu.dma_semaphore, #tpu.memory_space<semaphore_mem>>
    tpu.wait_dma2 semaphore(%104 : memref<!tpu.dma_semaphore, #tpu.memory_space<semaphore_mem>>) src(%100 : memref<1x128xf32, #tpu.memory_space<any>>) dst(%102 : memref<1x128xf32, #tpu.memory_space<vmem>>)
    %c5_i32_84 = arith.constant 5 : i32
    %c0_i32_85 = arith.constant 0 : i32
    %c0_i32_86 = arith.constant 0 : i32
    %105 = tpu.memref_slice %arg2[%c0_i32_85, %c0_i32_86] : memref<16x128xf32, #tpu.memory_space<any>> -> memref<1x128xf32, #tpu.memory_space<any>>
    %c5_i32_87 = arith.constant 5 : i32
    %c0_i32_88 = arith.constant 0 : i32
    %106 = tpu.memref_slice %arg5[%75, %c5_i32_87, %c0_i32_88] : memref<2x8x128xf32, #tpu.memory_space<vmem>> -> memref<1x1x128xf32, #tpu.memory_space<vmem>>
    %107 = tpu.memref_squeeze %106 : memref<1x1x128xf32, #tpu.memory_space<vmem>> -> memref<1x128xf32, #tpu.memory_space<vmem>>
    %108 = tpu.memref_slice %arg6[%75, %c5_i32_84] : memref<2x8x!tpu.dma_semaphore, #tpu.memory_space<semaphore_mem>> -> memref<1x1x!tpu.dma_semaphore, #tpu.memory_space<semaphore_mem>>
    %109 = tpu.memref_squeeze %108 : memref<1x1x!tpu.dma_semaphore, #tpu.memory_space<semaphore_mem>> -> memref<!tpu.dma_semaphore, #tpu.memory_space<semaphore_mem>>
    tpu.wait_dma2 semaphore(%109 : memref<!tpu.dma_semaphore, #tpu.memory_space<semaphore_mem>>) src(%105 : memref<1x128xf32, #tpu.memory_space<any>>) dst(%107 : memref<1x128xf32, #tpu.memory_space<vmem>>)
    %c6_i32_89 = arith.constant 6 : i32
    %c0_i32_90 = arith.constant 0 : i32
    %c0_i32_91 = arith.constant 0 : i32
    %110 = tpu.memref_slice %arg2[%c0_i32_90, %c0_i32_91] : memref<16x128xf32, #tpu.memory_space<any>> -> memref<1x128xf32, #tpu.memory_space<any>>
    %c6_i32_92 = arith.constant 6 : i32
    %c0_i32_93 = arith.constant 0 : i32
    %111 = tpu.memref_slice %arg5[%75, %c6_i32_92, %c0_i32_93] : memref<2x8x128xf32, #tpu.memory_space<vmem>> -> memref<1x1x128xf32, #tpu.memory_space<vmem>>
    %112 = tpu.memref_squeeze %111 : memref<1x1x128xf32, #tpu.memory_space<vmem>> -> memref<1x128xf32, #tpu.memory_space<vmem>>
    %113 = tpu.memref_slice %arg6[%75, %c6_i32_89] : memref<2x8x!tpu.dma_semaphore, #tpu.memory_space<semaphore_mem>> -> memref<1x1x!tpu.dma_semaphore, #tpu.memory_space<semaphore_mem>>
    %114 = tpu.memref_squeeze %113 : memref<1x1x!tpu.dma_semaphore, #tpu.memory_space<semaphore_mem>> -> memref<!tpu.dma_semaphore, #tpu.memory_space<semaphore_mem>>
    tpu.wait_dma2 semaphore(%114 : memref<!tpu.dma_semaphore, #tpu.memory_space<semaphore_mem>>) src(%110 : memref<1x128xf32, #tpu.memory_space<any>>) dst(%112 : memref<1x128xf32, #tpu.memory_space<vmem>>)
    %c7_i32_94 = arith.constant 7 : i32
    %c0_i32_95 = arith.constant 0 : i32
    %c0_i32_96 = arith.constant 0 : i32
    %115 = tpu.memref_slice %arg2[%c0_i32_95, %c0_i32_96] : memref<16x128xf32, #tpu.memory_space<any>> -> memref<1x128xf32, #tpu.memory_space<any>>
    %c7_i32_97 = arith.constant 7 : i32
    %c0_i32_98 = arith.constant 0 : i32
    %116 = tpu.memref_slice %arg5[%75, %c7_i32_97, %c0_i32_98] : memref<2x8x128xf32, #tpu.memory_space<vmem>> -> memref<1x1x128xf32, #tpu.memory_space<vmem>>
    %117 = tpu.memref_squeeze %116 : memref<1x1x128xf32, #tpu.memory_space<vmem>> -> memref<1x128xf32, #tpu.memory_space<vmem>>
    %118 = tpu.memref_slice %arg6[%75, %c7_i32_94] : memref<2x8x!tpu.dma_semaphore, #tpu.memory_space<semaphore_mem>> -> memref<1x1x!tpu.dma_semaphore, #tpu.memory_space<semaphore_mem>>
    %119 = tpu.memref_squeeze %118 : memref<1x1x!tpu.dma_semaphore, #tpu.memory_space<semaphore_mem>> -> memref<!tpu.dma_semaphore, #tpu.memory_space<semaphore_mem>>
    tpu.wait_dma2 semaphore(%119 : memref<!tpu.dma_semaphore, #tpu.memory_space<semaphore_mem>>) src(%115 : memref<1x128xf32, #tpu.memory_space<any>>) dst(%117 : memref<1x128xf32, #tpu.memory_space<vmem>>)
    %c8_i32 = arith.constant 8 : i32
    %120 = arith.muli %c0_i32_49, %c8_i32 : i32
    %121 = arith.addi %0, %120 : i32
    %c8_i32_99 = arith.constant 8 : i32
    %c0_i32_100 = arith.constant 0 : i32
    %122 = arith.cmpi eq, %c8_i32_99, %c0_i32_100 : i32
    %c1_i32_101 = arith.constant 1 : i32
    %123 = arith.select %122, %c1_i32_101, %c8_i32_99 : i32
    %124 = arith.remsi %121, %123 : i32
    %c0_i32_102 = arith.constant 0 : i32
    %125 = arith.cmpi ne, %124, %c0_i32_102 : i32
    %c0_i32_103 = arith.constant 0 : i32
    %126 = arith.cmpi slt, %124, %c0_i32_103 : i32
    %c0_i32_104 = arith.constant 0 : i32
    %127 = arith.cmpi slt, %123, %c0_i32_104 : i32
    %128 = arith.xori %126, %127 : i1
    %129 = arith.andi %128, %125 : i1
    %130 = arith.addi %124, %123 : i32
    %131 = arith.select %129, %130, %124 : i32
    %132 = tpu.assume_multiple %120, 8 : i32
    %133 = tpu.assume_multiple %131, 8 : i32
    %134 = arith.index_cast %75 : i32 to index
    %c0 = arith.constant 0 : index
    %c0_105 = arith.constant 0 : index
    %135 = vector.load %arg5[%134, %c0, %c0_105] : memref<2x8x128xf32, #tpu.memory_space<vmem>>, vector<1x8x128xf32>
    %136 = vector.shape_cast %135 : vector<1x8x128xf32> to vector<8x128xf32>
    %137 = arith.index_cast %133 : i32 to index
    %c0_106 = arith.constant 0 : index
    %138 = vector.load %arg3[%137, %c0_106] : memref<8x128xf32, #tpu.memory_space<vmem>>, vector<8x128xf32>
    %139 = arith.addf %136, %138 : vector<8x128xf32>
    %140 = arith.index_cast %132 : i32 to index
    %c0_107 = arith.constant 0 : index
    %141 = vector.load %arg4[%140, %c0_107] : memref<16x128xf32, #tpu.memory_space<vmem>>, vector<8x128xf32>
    tpu.vector_store %arg4[%140, %c0_107], %139 {strides = array<i32>} : memref<16x128xf32, #tpu.memory_space<vmem>>, vector<8x128xf32>,
    %c1_i32_108 = arith.constant 1 : i32
    %c2_i32_109 = arith.constant 2 : i32
    %c0_i32_110 = arith.constant 0 : i32
    %142 = arith.cmpi eq, %c2_i32_109, %c0_i32_110 : i32
    %c1_i32_111 = arith.constant 1 : i32
    %143 = arith.select %142, %c1_i32_111, %c2_i32_109 : i32
    %144 = arith.remsi %c1_i32_108, %143 : i32
    %c0_i32_112 = arith.constant 0 : i32
    %145 = arith.cmpi ne, %144, %c0_i32_112 : i32
    %c0_i32_113 = arith.constant 0 : i32
    %146 = arith.cmpi slt, %144, %c0_i32_113 : i32
    %c0_i32_114 = arith.constant 0 : i32
    %147 = arith.cmpi slt, %143, %c0_i32_114 : i32
    %148 = arith.xori %146, %147 : i1
    %149 = arith.andi %148, %145 : i1
    %150 = arith.addi %144, %143 : i32
    %151 = arith.select %149, %150, %144 : i32
    %c1_i32_115 = arith.constant 1 : i32
    %152 = arith.addi %c1_i32_108, %c1_i32_115 : i32
    %c2_i32_116 = arith.constant 2 : i32
    %153 = arith.cmpi slt, %152, %c2_i32_116 : i32
    %154 = arith.extui %153 : i1 to i32
    %c0_i32_117 = arith.constant 0 : i32
    %155 = arith.cmpi ne, %154, %c0_i32_117 : i32
    scf.if %155 {
      %c1_i32_170 = arith.constant 1 : i32
      %218 = arith.addi %c1_i32_108, %c1_i32_170 : i32
      %c1_i32_171 = arith.constant 1 : i32
      %219 = arith.subi %c1_i32_171, %151 : i32
      %c8_i32_172 = arith.constant 8 : i32
      %220 = arith.muli %218, %c8_i32_172 : i32
      %221 = arith.addi %0, %220 : i32
      %c0_i32_173 = arith.constant 0 : i32
      %222 = arith.addi %221, %c0_i32_173 : i32
      %223 = arith.index_cast %222 : i32 to index
      %224 = memref.load %arg1[%223] : memref<16xi32, #tpu.memory_space<smem>>
      %c0_i32_174 = arith.constant 0 : i32
      %c0_i32_175 = arith.constant 0 : i32
      %225 = tpu.memref_slice %arg2[%224, %c0_i32_175] : memref<16x128xf32, #tpu.memory_space<any>> -> memref<1x128xf32, #tpu.memory_space<any>>
      %c0_i32_176 = arith.constant 0 : i32
      %c0_i32_177 = arith.constant 0 : i32
      %226 = tpu.memref_slice %arg5[%219, %c0_i32_176, %c0_i32_177] : memref<2x8x128xf32, #tpu.memory_space<vmem>> -> memref<1x1x128xf32, #tpu.memory_space<vmem>>
      %227 = tpu.memref_squeeze %226 : memref<1x1x128xf32, #tpu.memory_space<vmem>> -> memref<1x128xf32, #tpu.memory_space<vmem>>
      %228 = tpu.memref_slice %arg6[%219, %c0_i32_174] : memref<2x8x!tpu.dma_semaphore, #tpu.memory_space<semaphore_mem>> -> memref<1x1x!tpu.dma_semaphore, #tpu.memory_space<semaphore_mem>>
      %229 = tpu.memref_squeeze %228 : memref<1x1x!tpu.dma_semaphore, #tpu.memory_space<semaphore_mem>> -> memref<!tpu.dma_semaphore, #tpu.memory_space<semaphore_mem>>
      tpu.enqueue_dma source(%225 : memref<1x128xf32, #tpu.memory_space<any>>) target(%227 : memref<1x128xf32, #tpu.memory_space<vmem>>) target_semaphore(%229 : memref<!tpu.dma_semaphore, #tpu.memory_space<semaphore_mem>>)
      %c1_i32_178 = arith.constant 1 : i32
      %230 = arith.addi %221, %c1_i32_178 : i32
      %231 = arith.index_cast %230 : i32 to index
      %232 = memref.load %arg1[%231] : memref<16xi32, #tpu.memory_space<smem>>
      %c1_i32_179 = arith.constant 1 : i32
      %c0_i32_180 = arith.constant 0 : i32
      %233 = tpu.memref_slice %arg2[%232, %c0_i32_180] : memref<16x128xf32, #tpu.memory_space<any>> -> memref<1x128xf32, #tpu.memory_space<any>>
      %c1_i32_181 = arith.constant 1 : i32
      %c0_i32_182 = arith.constant 0 : i32
      %234 = tpu.memref_slice %arg5[%219, %c1_i32_181, %c0_i32_182] : memref<2x8x128xf32, #tpu.memory_space<vmem>> -> memref<1x1x128xf32, #tpu.memory_space<vmem>>
      %235 = tpu.memref_squeeze %234 : memref<1x1x128xf32, #tpu.memory_space<vmem>> -> memref<1x128xf32, #tpu.memory_space<vmem>>
      %236 = tpu.memref_slice %arg6[%219, %c1_i32_179] : memref<2x8x!tpu.dma_semaphore, #tpu.memory_space<semaphore_mem>> -> memref<1x1x!tpu.dma_semaphore, #tpu.memory_space<semaphore_mem>>
      %237 = tpu.memref_squeeze %236 : memref<1x1x!tpu.dma_semaphore, #tpu.memory_space<semaphore_mem>> -> memref<!tpu.dma_semaphore, #tpu.memory_space<semaphore_mem>>
      tpu.enqueue_dma source(%233 : memref<1x128xf32, #tpu.memory_space<any>>) target(%235 : memref<1x128xf32, #tpu.memory_space<vmem>>) target_semaphore(%237 : memref<!tpu.dma_semaphore, #tpu.memory_space<semaphore_mem>>)
      %c2_i32_183 = arith.constant 2 : i32
      %238 = arith.addi %221, %c2_i32_183 : i32
      %239 = arith.index_cast %238 : i32 to index
      %240 = memref.load %arg1[%239] : memref<16xi32, #tpu.memory_space<smem>>
      %c2_i32_184 = arith.constant 2 : i32
      %c0_i32_185 = arith.constant 0 : i32
      %241 = tpu.memref_slice %arg2[%240, %c0_i32_185] : memref<16x128xf32, #tpu.memory_space<any>> -> memref<1x128xf32, #tpu.memory_space<any>>
      %c2_i32_186 = arith.constant 2 : i32
      %c0_i32_187 = arith.constant 0 : i32
      %242 = tpu.memref_slice %arg5[%219, %c2_i32_186, %c0_i32_187] : memref<2x8x128xf32, #tpu.memory_space<vmem>> -> memref<1x1x128xf32, #tpu.memory_space<vmem>>
      %243 = tpu.memref_squeeze %242 : memref<1x1x128xf32, #tpu.memory_space<vmem>> -> memref<1x128xf32, #tpu.memory_space<vmem>>
      %244 = tpu.memref_slice %arg6[%219, %c2_i32_184] : memref<2x8x!tpu.dma_semaphore, #tpu.memory_space<semaphore_mem>> -> memref<1x1x!tpu.dma_semaphore, #tpu.memory_space<semaphore_mem>>
      %245 = tpu.memref_squeeze %244 : memref<1x1x!tpu.dma_semaphore, #tpu.memory_space<semaphore_mem>> -> memref<!tpu.dma_semaphore, #tpu.memory_space<semaphore_mem>>
      tpu.enqueue_dma source(%241 : memref<1x128xf32, #tpu.memory_space<any>>) target(%243 : memref<1x128xf32, #tpu.memory_space<vmem>>) target_semaphore(%245 : memref<!tpu.dma_semaphore, #tpu.memory_space<semaphore_mem>>)
      %c3_i32_188 = arith.constant 3 : i32
      %246 = arith.addi %221, %c3_i32_188 : i32
      %247 = arith.index_cast %246 : i32 to index
      %248 = memref.load %arg1[%247] : memref<16xi32, #tpu.memory_space<smem>>
      %c3_i32_189 = arith.constant 3 : i32
      %c0_i32_190 = arith.constant 0 : i32
      %249 = tpu.memref_slice %arg2[%248, %c0_i32_190] : memref<16x128xf32, #tpu.memory_space<any>> -> memref<1x128xf32, #tpu.memory_space<any>>
      %c3_i32_191 = arith.constant 3 : i32
      %c0_i32_192 = arith.constant 0 : i32
      %250 = tpu.memref_slice %arg5[%219, %c3_i32_191, %c0_i32_192] : memref<2x8x128xf32, #tpu.memory_space<vmem>> -> memref<1x1x128xf32, #tpu.memory_space<vmem>>
      %251 = tpu.memref_squeeze %250 : memref<1x1x128xf32, #tpu.memory_space<vmem>> -> memref<1x128xf32, #tpu.memory_space<vmem>>
      %252 = tpu.memref_slice %arg6[%219, %c3_i32_189] : memref<2x8x!tpu.dma_semaphore, #tpu.memory_space<semaphore_mem>> -> memref<1x1x!tpu.dma_semaphore, #tpu.memory_space<semaphore_mem>>
      %253 = tpu.memref_squeeze %252 : memref<1x1x!tpu.dma_semaphore, #tpu.memory_space<semaphore_mem>> -> memref<!tpu.dma_semaphore, #tpu.memory_space<semaphore_mem>>
      tpu.enqueue_dma source(%249 : memref<1x128xf32, #tpu.memory_space<any>>) target(%251 : memref<1x128xf32, #tpu.memory_space<vmem>>) target_semaphore(%253 : memref<!tpu.dma_semaphore, #tpu.memory_space<semaphore_mem>>)
      %c4_i32_193 = arith.constant 4 : i32
      %254 = arith.addi %221, %c4_i32_193 : i32
      %255 = arith.index_cast %254 : i32 to index
      %256 = memref.load %arg1[%255] : memref<16xi32, #tpu.memory_space<smem>>
      %c4_i32_194 = arith.constant 4 : i32
      %c0_i32_195 = arith.constant 0 : i32
      %257 = tpu.memref_slice %arg2[%256, %c0_i32_195] : memref<16x128xf32, #tpu.memory_space<any>> -> memref<1x128xf32, #tpu.memory_space<any>>
      %c4_i32_196 = arith.constant 4 : i32
      %c0_i32_197 = arith.constant 0 : i32
      %258 = tpu.memref_slice %arg5[%219, %c4_i32_196, %c0_i32_197] : memref<2x8x128xf32, #tpu.memory_space<vmem>> -> memref<1x1x128xf32, #tpu.memory_space<vmem>>
      %259 = tpu.memref_squeeze %258 : memref<1x1x128xf32, #tpu.memory_space<vmem>> -> memref<1x128xf32, #tpu.memory_space<vmem>>
      %260 = tpu.memref_slice %arg6[%219, %c4_i32_194] : memref<2x8x!tpu.dma_semaphore, #tpu.memory_space<semaphore_mem>> -> memref<1x1x!tpu.dma_semaphore, #tpu.memory_space<semaphore_mem>>
      %261 = tpu.memref_squeeze %260 : memref<1x1x!tpu.dma_semaphore, #tpu.memory_space<semaphore_mem>> -> memref<!tpu.dma_semaphore, #tpu.memory_space<semaphore_mem>>
      tpu.enqueue_dma source(%257 : memref<1x128xf32, #tpu.memory_space<any>>) target(%259 : memref<1x128xf32, #tpu.memory_space<vmem>>) target_semaphore(%261 : memref<!tpu.dma_semaphore, #tpu.memory_space<semaphore_mem>>)
      %c5_i32_198 = arith.constant 5 : i32
      %262 = arith.addi %221, %c5_i32_198 : i32
      %263 = arith.index_cast %262 : i32 to index
      %264 = memref.load %arg1[%263] : memref<16xi32, #tpu.memory_space<smem>>
      %c5_i32_199 = arith.constant 5 : i32
      %c0_i32_200 = arith.constant 0 : i32
      %265 = tpu.memref_slice %arg2[%264, %c0_i32_200] : memref<16x128xf32, #tpu.memory_space<any>> -> memref<1x128xf32, #tpu.memory_space<any>>
      %c5_i32_201 = arith.constant 5 : i32
      %c0_i32_202 = arith.constant 0 : i32
      %266 = tpu.memref_slice %arg5[%219, %c5_i32_201, %c0_i32_202] : memref<2x8x128xf32, #tpu.memory_space<vmem>> -> memref<1x1x128xf32, #tpu.memory_space<vmem>>
      %267 = tpu.memref_squeeze %266 : memref<1x1x128xf32, #tpu.memory_space<vmem>> -> memref<1x128xf32, #tpu.memory_space<vmem>>
      %268 = tpu.memref_slice %arg6[%219, %c5_i32_199] : memref<2x8x!tpu.dma_semaphore, #tpu.memory_space<semaphore_mem>> -> memref<1x1x!tpu.dma_semaphore, #tpu.memory_space<semaphore_mem>>
      %269 = tpu.memref_squeeze %268 : memref<1x1x!tpu.dma_semaphore, #tpu.memory_space<semaphore_mem>> -> memref<!tpu.dma_semaphore, #tpu.memory_space<semaphore_mem>>
      tpu.enqueue_dma source(%265 : memref<1x128xf32, #tpu.memory_space<any>>) target(%267 : memref<1x128xf32, #tpu.memory_space<vmem>>) target_semaphore(%269 : memref<!tpu.dma_semaphore, #tpu.memory_space<semaphore_mem>>)
      %c6_i32_203 = arith.constant 6 : i32
      %270 = arith.addi %221, %c6_i32_203 : i32
      %271 = arith.index_cast %270 : i32 to index
      %272 = memref.load %arg1[%271] : memref<16xi32, #tpu.memory_space<smem>>
      %c6_i32_204 = arith.constant 6 : i32
      %c0_i32_205 = arith.constant 0 : i32
      %273 = tpu.memref_slice %arg2[%272, %c0_i32_205] : memref<16x128xf32, #tpu.memory_space<any>> -> memref<1x128xf32, #tpu.memory_space<any>>
      %c6_i32_206 = arith.constant 6 : i32
      %c0_i32_207 = arith.constant 0 : i32
      %274 = tpu.memref_slice %arg5[%219, %c6_i32_206, %c0_i32_207] : memref<2x8x128xf32, #tpu.memory_space<vmem>> -> memref<1x1x128xf32, #tpu.memory_space<vmem>>
      %275 = tpu.memref_squeeze %274 : memref<1x1x128xf32, #tpu.memory_space<vmem>> -> memref<1x128xf32, #tpu.memory_space<vmem>>
      %276 = tpu.memref_slice %arg6[%219, %c6_i32_204] : memref<2x8x!tpu.dma_semaphore, #tpu.memory_space<semaphore_mem>> -> memref<1x1x!tpu.dma_semaphore, #tpu.memory_space<semaphore_mem>>
      %277 = tpu.memref_squeeze %276 : memref<1x1x!tpu.dma_semaphore, #tpu.memory_space<semaphore_mem>> -> memref<!tpu.dma_semaphore, #tpu.memory_space<semaphore_mem>>
      tpu.enqueue_dma source(%273 : memref<1x128xf32, #tpu.memory_space<any>>) target(%275 : memref<1x128xf32, #tpu.memory_space<vmem>>) target_semaphore(%277 : memref<!tpu.dma_semaphore, #tpu.memory_space<semaphore_mem>>)
      %c7_i32_208 = arith.constant 7 : i32
      %278 = arith.addi %221, %c7_i32_208 : i32
      %279 = arith.index_cast %278 : i32 to index
      %280 = memref.load %arg1[%279] : memref<16xi32, #tpu.memory_space<smem>>
      %c7_i32_209 = arith.constant 7 : i32
      %c0_i32_210 = arith.constant 0 : i32
      %281 = tpu.memref_slice %arg2[%280, %c0_i32_210] : memref<16x128xf32, #tpu.memory_space<any>> -> memref<1x128xf32, #tpu.memory_space<any>>
      %c7_i32_211 = arith.constant 7 : i32
      %c0_i32_212 = arith.constant 0 : i32
      %282 = tpu.memref_slice %arg5[%219, %c7_i32_211, %c0_i32_212] : memref<2x8x128xf32, #tpu.memory_space<vmem>> -> memref<1x1x128xf32, #tpu.memory_space<vmem>>
      %283 = tpu.memref_squeeze %282 : memref<1x1x128xf32, #tpu.memory_space<vmem>> -> memref<1x128xf32, #tpu.memory_space<vmem>>
      %284 = tpu.memref_slice %arg6[%219, %c7_i32_209] : memref<2x8x!tpu.dma_semaphore, #tpu.memory_space<semaphore_mem>> -> memref<1x1x!tpu.dma_semaphore, #tpu.memory_space<semaphore_mem>>
      %285 = tpu.memref_squeeze %284 : memref<1x1x!tpu.dma_semaphore, #tpu.memory_space<semaphore_mem>> -> memref<!tpu.dma_semaphore, #tpu.memory_space<semaphore_mem>>
      tpu.enqueue_dma source(%281 : memref<1x128xf32, #tpu.memory_space<any>>) target(%283 : memref<1x128xf32, #tpu.memory_space<vmem>>) target_semaphore(%285 : memref<!tpu.dma_semaphore, #tpu.memory_space<semaphore_mem>>)
    } else {
    }
    %c0_i32_118 = arith.constant 0 : i32
    %c0_i32_119 = arith.constant 0 : i32
    %c0_i32_120 = arith.constant 0 : i32
    %156 = tpu.memref_slice %arg2[%c0_i32_119, %c0_i32_120] : memref<16x128xf32, #tpu.memory_space<any>> -> memref<1x128xf32, #tpu.memory_space<any>>
    %c0_i32_121 = arith.constant 0 : i32
    %c0_i32_122 = arith.constant 0 : i32
    %157 = tpu.memref_slice %arg5[%151, %c0_i32_121, %c0_i32_122] : memref<2x8x128xf32, #tpu.memory_space<vmem>> -> memref<1x1x128xf32, #tpu.memory_space<vmem>>
    %158 = tpu.memref_squeeze %157 : memref<1x1x128xf32, #tpu.memory_space<vmem>> -> memref<1x128xf32, #tpu.memory_space<vmem>>
    %159 = tpu.memref_slice %arg6[%151, %c0_i32_118] : memref<2x8x!tpu.dma_semaphore, #tpu.memory_space<semaphore_mem>> -> memref<1x1x!tpu.dma_semaphore, #tpu.memory_space<semaphore_mem>>
    %160 = tpu.memref_squeeze %159 : memref<1x1x!tpu.dma_semaphore, #tpu.memory_space<semaphore_mem>> -> memref<!tpu.dma_semaphore, #tpu.memory_space<semaphore_mem>>
    tpu.wait_dma2 semaphore(%160 : memref<!tpu.dma_semaphore, #tpu.memory_space<semaphore_mem>>) src(%156 : memref<1x128xf32, #tpu.memory_space<any>>) dst(%158 : memref<1x128xf32, #tpu.memory_space<vmem>>)
    %c1_i32_123 = arith.constant 1 : i32
    %c0_i32_124 = arith.constant 0 : i32
    %c0_i32_125 = arith.constant 0 : i32
    %161 = tpu.memref_slice %arg2[%c0_i32_124, %c0_i32_125] : memref<16x128xf32, #tpu.memory_space<any>> -> memref<1x128xf32, #tpu.memory_space<any>>
    %c1_i32_126 = arith.constant 1 : i32
    %c0_i32_127 = arith.constant 0 : i32
    %162 = tpu.memref_slice %arg5[%151, %c1_i32_126, %c0_i32_127] : memref<2x8x128xf32, #tpu.memory_space<vmem>> -> memref<1x1x128xf32, #tpu.memory_space<vmem>>
    %163 = tpu.memref_squeeze %162 : memref<1x1x128xf32, #tpu.memory_space<vmem>> -> memref<1x128xf32, #tpu.memory_space<vmem>>
    %164 = tpu.memref_slice %arg6[%151, %c1_i32_123] : memref<2x8x!tpu.dma_semaphore, #tpu.memory_space<semaphore_mem>> -> memref<1x1x!tpu.dma_semaphore, #tpu.memory_space<semaphore_mem>>
    %165 = tpu.memref_squeeze %164 : memref<1x1x!tpu.dma_semaphore, #tpu.memory_space<semaphore_mem>> -> memref<!tpu.dma_semaphore, #tpu.memory_space<semaphore_mem>>
    tpu.wait_dma2 semaphore(%165 : memref<!tpu.dma_semaphore, #tpu.memory_space<semaphore_mem>>) src(%161 : memref<1x128xf32, #tpu.memory_space<any>>) dst(%163 : memref<1x128xf32, #tpu.memory_space<vmem>>)
    %c2_i32_128 = arith.constant 2 : i32
    %c0_i32_129 = arith.constant 0 : i32
    %c0_i32_130 = arith.constant 0 : i32
    %166 = tpu.memref_slice %arg2[%c0_i32_129, %c0_i32_130] : memref<16x128xf32, #tpu.memory_space<any>> -> memref<1x128xf32, #tpu.memory_space<any>>
    %c2_i32_131 = arith.constant 2 : i32
    %c0_i32_132 = arith.constant 0 : i32
    %167 = tpu.memref_slice %arg5[%151, %c2_i32_131, %c0_i32_132] : memref<2x8x128xf32, #tpu.memory_space<vmem>> -> memref<1x1x128xf32, #tpu.memory_space<vmem>>
    %168 = tpu.memref_squeeze %167 : memref<1x1x128xf32, #tpu.memory_space<vmem>> -> memref<1x128xf32, #tpu.memory_space<vmem>>
    %169 = tpu.memref_slice %arg6[%151, %c2_i32_128] : memref<2x8x!tpu.dma_semaphore, #tpu.memory_space<semaphore_mem>> -> memref<1x1x!tpu.dma_semaphore, #tpu.memory_space<semaphore_mem>>
    %170 = tpu.memref_squeeze %169 : memref<1x1x!tpu.dma_semaphore, #tpu.memory_space<semaphore_mem>> -> memref<!tpu.dma_semaphore, #tpu.memory_space<semaphore_mem>>
    tpu.wait_dma2 semaphore(%170 : memref<!tpu.dma_semaphore, #tpu.memory_space<semaphore_mem>>) src(%166 : memref<1x128xf32, #tpu.memory_space<any>>) dst(%168 : memref<1x128xf32, #tpu.memory_space<vmem>>)
    %c3_i32_133 = arith.constant 3 : i32
    %c0_i32_134 = arith.constant 0 : i32
    %c0_i32_135 = arith.constant 0 : i32
    %171 = tpu.memref_slice %arg2[%c0_i32_134, %c0_i32_135] : memref<16x128xf32, #tpu.memory_space<any>> -> memref<1x128xf32, #tpu.memory_space<any>>
    %c3_i32_136 = arith.constant 3 : i32
    %c0_i32_137 = arith.constant 0 : i32
    %172 = tpu.memref_slice %arg5[%151, %c3_i32_136, %c0_i32_137] : memref<2x8x128xf32, #tpu.memory_space<vmem>> -> memref<1x1x128xf32, #tpu.memory_space<vmem>>
    %173 = tpu.memref_squeeze %172 : memref<1x1x128xf32, #tpu.memory_space<vmem>> -> memref<1x128xf32, #tpu.memory_space<vmem>>
    %174 = tpu.memref_slice %arg6[%151, %c3_i32_133] : memref<2x8x!tpu.dma_semaphore, #tpu.memory_space<semaphore_mem>> -> memref<1x1x!tpu.dma_semaphore, #tpu.memory_space<semaphore_mem>>
    %175 = tpu.memref_squeeze %174 : memref<1x1x!tpu.dma_semaphore, #tpu.memory_space<semaphore_mem>> -> memref<!tpu.dma_semaphore, #tpu.memory_space<semaphore_mem>>
    tpu.wait_dma2 semaphore(%175 : memref<!tpu.dma_semaphore, #tpu.memory_space<semaphore_mem>>) src(%171 : memref<1x128xf32, #tpu.memory_space<any>>) dst(%173 : memref<1x128xf32, #tpu.memory_space<vmem>>)
    %c4_i32_138 = arith.constant 4 : i32
    %c0_i32_139 = arith.constant 0 : i32
    %c0_i32_140 = arith.constant 0 : i32
    %176 = tpu.memref_slice %arg2[%c0_i32_139, %c0_i32_140] : memref<16x128xf32, #tpu.memory_space<any>> -> memref<1x128xf32, #tpu.memory_space<any>>
    %c4_i32_141 = arith.constant 4 : i32
    %c0_i32_142 = arith.constant 0 : i32
    %177 = tpu.memref_slice %arg5[%151, %c4_i32_141, %c0_i32_142] : memref<2x8x128xf32, #tpu.memory_space<vmem>> -> memref<1x1x128xf32, #tpu.memory_space<vmem>>
    %178 = tpu.memref_squeeze %177 : memref<1x1x128xf32, #tpu.memory_space<vmem>> -> memref<1x128xf32, #tpu.memory_space<vmem>>
    %179 = tpu.memref_slice %arg6[%151, %c4_i32_138] : memref<2x8x!tpu.dma_semaphore, #tpu.memory_space<semaphore_mem>> -> memref<1x1x!tpu.dma_semaphore, #tpu.memory_space<semaphore_mem>>
    %180 = tpu.memref_squeeze %179 : memref<1x1x!tpu.dma_semaphore, #tpu.memory_space<semaphore_mem>> -> memref<!tpu.dma_semaphore, #tpu.memory_space<semaphore_mem>>
    tpu.wait_dma2 semaphore(%180 : memref<!tpu.dma_semaphore, #tpu.memory_space<semaphore_mem>>) src(%176 : memref<1x128xf32, #tpu.memory_space<any>>) dst(%178 : memref<1x128xf32, #tpu.memory_space<vmem>>)
    %c5_i32_143 = arith.constant 5 : i32
    %c0_i32_144 = arith.constant 0 : i32
    %c0_i32_145 = arith.constant 0 : i32
    %181 = tpu.memref_slice %arg2[%c0_i32_144, %c0_i32_145] : memref<16x128xf32, #tpu.memory_space<any>> -> memref<1x128xf32, #tpu.memory_space<any>>
    %c5_i32_146 = arith.constant 5 : i32
    %c0_i32_147 = arith.constant 0 : i32
    %182 = tpu.memref_slice %arg5[%151, %c5_i32_146, %c0_i32_147] : memref<2x8x128xf32, #tpu.memory_space<vmem>> -> memref<1x1x128xf32, #tpu.memory_space<vmem>>
    %183 = tpu.memref_squeeze %182 : memref<1x1x128xf32, #tpu.memory_space<vmem>> -> memref<1x128xf32, #tpu.memory_space<vmem>>
    %184 = tpu.memref_slice %arg6[%151, %c5_i32_143] : memref<2x8x!tpu.dma_semaphore, #tpu.memory_space<semaphore_mem>> -> memref<1x1x!tpu.dma_semaphore, #tpu.memory_space<semaphore_mem>>
    %185 = tpu.memref_squeeze %184 : memref<1x1x!tpu.dma_semaphore, #tpu.memory_space<semaphore_mem>> -> memref<!tpu.dma_semaphore, #tpu.memory_space<semaphore_mem>>
    tpu.wait_dma2 semaphore(%185 : memref<!tpu.dma_semaphore, #tpu.memory_space<semaphore_mem>>) src(%181 : memref<1x128xf32, #tpu.memory_space<any>>) dst(%183 : memref<1x128xf32, #tpu.memory_space<vmem>>)
    %c6_i32_148 = arith.constant 6 : i32
    %c0_i32_149 = arith.constant 0 : i32
    %c0_i32_150 = arith.constant 0 : i32
    %186 = tpu.memref_slice %arg2[%c0_i32_149, %c0_i32_150] : memref<16x128xf32, #tpu.memory_space<any>> -> memref<1x128xf32, #tpu.memory_space<any>>
    %c6_i32_151 = arith.constant 6 : i32
    %c0_i32_152 = arith.constant 0 : i32
    %187 = tpu.memref_slice %arg5[%151, %c6_i32_151, %c0_i32_152] : memref<2x8x128xf32, #tpu.memory_space<vmem>> -> memref<1x1x128xf32, #tpu.memory_space<vmem>>
    %188 = tpu.memref_squeeze %187 : memref<1x1x128xf32, #tpu.memory_space<vmem>> -> memref<1x128xf32, #tpu.memory_space<vmem>>
    %189 = tpu.memref_slice %arg6[%151, %c6_i32_148] : memref<2x8x!tpu.dma_semaphore, #tpu.memory_space<semaphore_mem>> -> memref<1x1x!tpu.dma_semaphore, #tpu.memory_space<semaphore_mem>>
    %190 = tpu.memref_squeeze %189 : memref<1x1x!tpu.dma_semaphore, #tpu.memory_space<semaphore_mem>> -> memref<!tpu.dma_semaphore, #tpu.memory_space<semaphore_mem>>
    tpu.wait_dma2 semaphore(%190 : memref<!tpu.dma_semaphore, #tpu.memory_space<semaphore_mem>>) src(%186 : memref<1x128xf32, #tpu.memory_space<any>>) dst(%188 : memref<1x128xf32, #tpu.memory_space<vmem>>)
    %c7_i32_153 = arith.constant 7 : i32
    %c0_i32_154 = arith.constant 0 : i32
    %c0_i32_155 = arith.constant 0 : i32
    %191 = tpu.memref_slice %arg2[%c0_i32_154, %c0_i32_155] : memref<16x128xf32, #tpu.memory_space<any>> -> memref<1x128xf32, #tpu.memory_space<any>>
    %c7_i32_156 = arith.constant 7 : i32
    %c0_i32_157 = arith.constant 0 : i32
    %192 = tpu.memref_slice %arg5[%151, %c7_i32_156, %c0_i32_157] : memref<2x8x128xf32, #tpu.memory_space<vmem>> -> memref<1x1x128xf32, #tpu.memory_space<vmem>>
    %193 = tpu.memref_squeeze %192 : memref<1x1x128xf32, #tpu.memory_space<vmem>> -> memref<1x128xf32, #tpu.memory_space<vmem>>
    %194 = tpu.memref_slice %arg6[%151, %c7_i32_153] : memref<2x8x!tpu.dma_semaphore, #tpu.memory_space<semaphore_mem>> -> memref<1x1x!tpu.dma_semaphore, #tpu.memory_space<semaphore_mem>>
    %195 = tpu.memref_squeeze %194 : memref<1x1x!tpu.dma_semaphore, #tpu.memory_space<semaphore_mem>> -> memref<!tpu.dma_semaphore, #tpu.memory_space<semaphore_mem>>
    tpu.wait_dma2 semaphore(%195 : memref<!tpu.dma_semaphore, #tpu.memory_space<semaphore_mem>>) src(%191 : memref<1x128xf32, #tpu.memory_space<any>>) dst(%193 : memref<1x128xf32, #tpu.memory_space<vmem>>)
    %c8_i32_158 = arith.constant 8 : i32
    %196 = arith.muli %c1_i32_108, %c8_i32_158 : i32
    %197 = arith.addi %0, %196 : i32
    %c8_i32_159 = arith.constant 8 : i32
    %c0_i32_160 = arith.constant 0 : i32
    %198 = arith.cmpi eq, %c8_i32_159, %c0_i32_160 : i32
    %c1_i32_161 = arith.constant 1 : i32
    %199 = arith.select %198, %c1_i32_161, %c8_i32_159 : i32
    %200 = arith.remsi %197, %199 : i32
    %c0_i32_162 = arith.constant 0 : i32
    %201 = arith.cmpi ne, %200, %c0_i32_162 : i32
    %c0_i32_163 = arith.constant 0 : i32
    %202 = arith.cmpi slt, %200, %c0_i32_163 : i32
    %c0_i32_164 = arith.constant 0 : i32
    %203 = arith.cmpi slt, %199, %c0_i32_164 : i32
    %204 = arith.xori %202, %203 : i1
    %205 = arith.andi %204, %201 : i1
    %206 = arith.addi %200, %199 : i32
    %207 = arith.select %205, %206, %200 : i32
    %208 = tpu.assume_multiple %196, 8 : i32
    %209 = tpu.assume_multiple %207, 8 : i32
    %210 = arith.index_cast %151 : i32 to index
    %c0_165 = arith.constant 0 : index
    %c0_166 = arith.constant 0 : index
    %211 = vector.load %arg5[%210, %c0_165, %c0_166] : memref<2x8x128xf32, #tpu.memory_space<vmem>>, vector<1x8x128xf32>
    %212 = vector.shape_cast %211 : vector<1x8x128xf32> to vector<8x128xf32>
    %213 = arith.index_cast %209 : i32 to index
    %c0_167 = arith.constant 0 : index
    %214 = vector.load %arg3[%213, %c0_167] : memref<8x128xf32, #tpu.memory_space<vmem>>, vector<8x128xf32>
    %215 = arith.addf %212, %214 : vector<8x128xf32>
    %216 = arith.index_cast %208 : i32 to index
    %c0_168 = arith.constant 0 : index
    %217 = vector.load %arg4[%216, %c0_168] : memref<16x128xf32, #tpu.memory_space<vmem>>, vector<8x128xf32>
    tpu.vector_store %arg4[%216, %c0_168], %215 {strides = array<i32>} : memref<16x128xf32, #tpu.memory_space<vmem>>, vector<8x128xf32>,
    %c2_i32_169 = arith.constant 2 : i32
    return
  }
  func.func @transform_1(%arg0: i32, %arg1: memref<16xi32, #tpu.memory_space<smem>>) -> (i32, i32) {
    %c0_i32 = arith.constant 0 : i32
    %c0_i32_0 = arith.constant 0 : i32
    %c0_i32_1 = arith.constant 0 : i32
    return %c0_i32, %c0_i32_0 : i32, i32
  }
  func.func @transform_2(%arg0: i32, %arg1: memref<16xi32, #tpu.memory_space<smem>>) -> (i32, i32) {
    %c0_i32 = arith.constant 0 : i32
    %c0_i32_0 = arith.constant 0 : i32
    return %arg0, %c0_i32 : i32, i32
  }
}

</mosaic_0001>

<llo_original>
// kernel: tpu_custom_call.1
$region0: #{tpu_custom_call.1}
  #allocation0 [shape = 'u32[]', space=smem, size = 0x4, offset = 0x4, fixed_abs, tag = 'smem constant byte address 0x4 - core index']
  #allocation1 [shape = 'u32[72,128]{1,0:T(1,128)}', space=vmem, size = 0x9000, scoped, tag = 'internal scratch']
  #allocation2 [shape = 'f32[2,8,128]{2,1,0:T(8,128)}', space=vmem, size = 0x2000, scoped, tag = 'scratch operand']
  #allocation3 [shape = 's32[16]{0}', space=sflag, size = 0x40, scoped, tag = 'scratch operand']
  #allocation4 [shape = 's32[1]{0}', space=sflag, size = 0x4, scoped, tag = 'scoped memory for tpu_custom_call.1']
  #allocation5 [shape = 'u8[512]{0}', space=smem, size = 0x200, scoped, tag = 'prefetched SMEM operand 0']
  #allocation10 [shape = 's32[]', space=sflag, size = 0x4, offset = 0, fixed_abs, tag = 'sflag constant byte address 0x0 - dummy sync flag']
  #allocation11 [shape = 's32[]', space=sflag, size = 0x4, offset = 0, fixed_abs, tag = 'sflag constant byte address 0x0 - dummy sync flag']
  #allocation12 [shape = 'u32[]', space=smem, size = 0x4, offset = 0x44, fixed_abs, tag = 'smem constant byte address 0x44 - assertion arg 0']
  #allocation13 [shape = 'u32[]', space=smem, size = 0x4, offset = 0x48, fixed_abs, tag = 'smem constant byte address 0x48 - assertion arg 1']
  #allocation14 [shape = 's32[]', space=sflag, size = 0x4, offset = 0, fixed_abs, tag = 'sflag constant byte address 0x0 - dummy sync flag']
  #allocation15 [shape = 's32[]', space=sflag, size = 0x4, offset = 0, fixed_abs, tag = 'sflag constant byte address 0x0 - dummy sync flag']
  #allocation16 [shape = 's32[]', space=sflag, size = 0x4, offset = 0, fixed_abs, tag = 'sflag constant byte address 0x0 - dummy sync flag']
  #allocation17 [shape = 's32[]', space=sflag, size = 0x4, offset = 0, fixed_abs, tag = 'sflag constant byte address 0x0 - dummy sync flag']
  #allocation18 [shape = 's32[]', space=sflag, size = 0x4, offset = 0, fixed_abs, tag = 'sflag constant byte address 0x0 - dummy sync flag']
  #allocation19 [shape = 's32[]', space=sflag, size = 0x4, offset = 0, fixed_abs, tag = 'sflag constant byte address 0x0 - dummy sync flag']
  #allocation20 [shape = 's32[]', space=sflag, size = 0x4, offset = 0, fixed_abs, tag = 'sflag constant byte address 0x0 - dummy sync flag']
  #allocation21 [shape = 's32[]', space=sflag, size = 0x4, offset = 0, fixed_abs, tag = 'sflag constant byte address 0x0 - dummy sync flag']
  #allocation22 [shape = 's32[]', space=sflag, size = 0x4, offset = 0, fixed_abs, tag = 'sflag constant byte address 0x0 - dummy sync flag']
  #allocation23 [shape = 's32[]', space=sflag, size = 0x4, offset = 0, fixed_abs, tag = 'sflag constant byte address 0x0 - dummy sync flag']
  #allocation24 [shape = 's32[]', space=sflag, size = 0x4, offset = 0, fixed_abs, tag = 'sflag constant byte address 0x0 - dummy sync flag']
  #allocation25 [shape = 's32[]', space=sflag, size = 0x4, offset = 0, fixed_abs, tag = 'sflag constant byte address 0x0 - dummy sync flag']
  #allocation26 [shape = 's32[]', space=sflag, size = 0x4, offset = 0, fixed_abs, tag = 'sflag constant byte address 0x0 - dummy sync flag']
  #allocation27 [shape = 's32[]', space=sflag, size = 0x4, offset = 0, fixed_abs, tag = 'sflag constant byte address 0x0 - dummy sync flag']
  #allocation28 [shape = 's32[]', space=sflag, size = 0x4, offset = 0, fixed_abs, tag = 'sflag constant byte address 0x0 - dummy sync flag']
  #allocation29 [shape = 's32[]', space=sflag, size = 0x4, offset = 0, fixed_abs, tag = 'sflag constant byte address 0x0 - dummy sync flag']
  #allocation30 [shape = 's32[]', space=sflag, size = 0x4, offset = 0, fixed_abs, tag = 'sflag constant byte address 0x0 - dummy sync flag']
  #allocation31 [shape = 's32[]', space=sflag, size = 0x4, offset = 0, fixed_abs, tag = 'sflag constant byte address 0x0 - dummy sync flag']
  #allocation32 [shape = 's32[]', space=sflag, size = 0x4, offset = 0, fixed_abs, tag = 'sflag constant byte address 0x0 - dummy sync flag']
  #allocation33 [shape = 's32[]', space=sflag, size = 0x4, offset = 0, fixed_abs, tag = 'sflag constant byte address 0x0 - dummy sync flag']
  #allocation34 [shape = 's32[]', space=sflag, size = 0x4, offset = 0, fixed_abs, tag = 'sflag constant byte address 0x0 - dummy sync flag']
  #allocation35 [shape = 's32[]', space=sflag, size = 0x4, offset = 0, fixed_abs, tag = 'sflag constant byte address 0x0 - dummy sync flag']
  #allocation36 [shape = 's32[]', space=sflag, size = 0x4, offset = 0, fixed_abs, tag = 'sflag constant byte address 0x0 - dummy sync flag']
  #allocation37 [shape = 's32[]', space=sflag, size = 0x4, offset = 0, fixed_abs, tag = 'sflag constant byte address 0x0 - dummy sync flag']
  #allocation38 [shape = 's32[]', space=sflag, size = 0x4, offset = 0, fixed_abs, tag = 'sflag constant byte address 0x0 - dummy sync flag']
  #allocation39 [shape = 's32[]', space=sflag, size = 0x4, offset = 0, fixed_abs, tag = 'sflag constant byte address 0x0 - dummy sync flag']
  #allocation40 [shape = 's32[]', space=sflag, size = 0x4, offset = 0, fixed_abs, tag = 'sflag constant byte address 0x0 - dummy sync flag']
  #allocation41 [shape = 's32[]', space=sflag, size = 0x4, offset = 0, fixed_abs, tag = 'sflag constant byte address 0x0 - dummy sync flag']
  #allocation42 [shape = 's32[]', space=sflag, size = 0x4, offset = 0, fixed_abs, tag = 'sflag constant byte address 0x0 - dummy sync flag']
  #allocation43 [shape = 's32[]', space=sflag, size = 0x4, offset = 0, fixed_abs, tag = 'sflag constant byte address 0x0 - dummy sync flag']
  %s0 = inlined_call_operand.hbm [shape: s32[16], index: 0, kind: input, shape index: {}]
  %s1 = inlined_call_operand.hbm [shape: f32[16,128], index: 1, kind: input, shape index: {}]
  %s2 = inlined_call_operand.hbm [shape: f32[8,128], index: 2, kind: input, shape index: {}]
  %s3 = inlined_call_operand.hbm [shape: f32[16,128], index: 3, kind: output, shape index: {}]
  %s4 = sld [smem:[#allocation0]]
  $region82: #{tpu_custom_call.1} parent=0
    _
  %s6 = ssub.s32 1, %s4
  %s7 = scalar_select 0, %s6, %s4
  %s9 = sshll.u32 %s0, 4
  %s10 = int_to_ptr.hbm [resolvable:$true] %s9
  %12 = dma.hbm_to_smem %s10, 16, [#allocation5], [#allocation4]
  %14 = dma.done [#allocation4], 16
  %15 = sfence
  $region1: #{tpu_custom_call.1} parent=0
    #allocation6 [shape = 'u8[4096]{0}', space=vmem, size = 0x1000, scoped, tag = 'input window, operand 2, single buffered']
    #allocation7 [shape = 's32[1]{0}', space=sflag, size = 0x4, scoped, tag = 'scoped memory for tpu_custom_call.1']
    #allocation8 [shape = 's32[1]{0}', space=sflag, size = 0x4, scoped, tag = 'scoped memory for tpu_custom_call.1']
    #allocation9 [shape = 'u8[8192]{0}', space=vmem, size = 0x2000, scoped, tag = 'output window, operand 0, single buffered']
    %16 = vsyncpa [#allocation7], 0
    %17 = vsyncpa [#allocation8], 0
    // Predicated region
    $region2: #{tpu_custom_call.1} parent=1 // pred_check
      _
    $region3: #{tpu_custom_call.1} parent=1 // pred_check_branch
      %19 = sbr.rel (0) target = $region5
    $region4: #{tpu_custom_call.1} parent=1 // pred_region
      %21 = vsyncadd [#allocation7], 0
      %s23 = sshll.u32 %s2, 4
      %s24 = int_to_ptr.hbm [resolvable:$true] %s23
      %s25 = sshll.u32 [#allocation6], 4
      %s26 = int_to_ptr.vmem [resolvable:$true] %s25
      %28 = dma.hbm_to_vmem [thread:$0]  %s24, 128, %s26, [#allocation7]
    $region5: #{tpu_custom_call.1} parent=1 // pred_fallthru
      _
    // Predicated region
    $region6: #{tpu_custom_call.1} parent=1 // pred_check
      _
    $region7: #{tpu_custom_call.1} parent=1 // pred_check_branch
      %30 = sbr.rel (0) target = $region9
    $region8: #{tpu_custom_call.1} parent=1 // pred_region
      %32 = dma.done [#allocation7], 128
    $region9: #{tpu_custom_call.1} parent=1 // pred_fallthru
      _
    %s33 = smul.u32 0, 16
    %s34 = sld [smem:[#allocation5 + %s33]]
    %s35 = scalar_lea.hbm %s1, %s34
    // Predicated region
    $region10: #{tpu_custom_call.1} parent=1 // pred_check
      _
    $region11: #{tpu_custom_call.1} parent=1 // pred_check_branch
      %37 = sbr.rel target = $region13
    $region12: #{tpu_custom_call.1} parent=1 // pred_region
      %38 = sst [smem:[#allocation12]] [#allocation11]
      %39 = sst [smem:[#allocation13]] [#allocation10]
    $region13: #{tpu_custom_call.1} parent=1 // pred_fallthru
      _
    %41 = shalt.err (0)
    %s43 = sshll.u32 %s35, 4
    %s44 = int_to_ptr.hbm [resolvable:$true] %s43
    %s45 = sshll.u32 [#allocation2], 4
    %s46 = int_to_ptr.vmem [resolvable:$true] %s45
    %48 = dma.hbm_to_vmem [thread:$0]  %s44, 16, %s46, [#allocation3]
    %s49 = sadd.s32 %s33, 1
    %s50 = sld [smem:[#allocation5 + %s49]]
    %s51 = scalar_lea.hbm %s1, %s50
    %s52 = scalar_lea.vmem [#allocation2], 1
    %s53 = scalar_lea.sflag [#allocation3], 1
    // Predicated region
    $region14: #{tpu_custom_call.1} parent=1 // pred_check
      _
    $region15: #{tpu_custom_call.1} parent=1 // pred_check_branch
      %55 = sbr.rel target = $region17
    $region16: #{tpu_custom_call.1} parent=1 // pred_region
      %56 = sst [smem:[#allocation12]] [#allocation15]
      %57 = sst [smem:[#allocation13]] [#allocation14]
    $region17: #{tpu_custom_call.1} parent=1 // pred_fallthru
      _
    %59 = shalt.err (0)
    %s61 = sshll.u32 %s51, 4
    %s62 = int_to_ptr.hbm [resolvable:$true] %s61
    %s63 = sshll.u32 %s52, 4
    %s64 = int_to_ptr.vmem [resolvable:$true] %s63
    %66 = dma.hbm_to_vmem [thread:$0]  %s62, 16, %s64, %s53
    %s67 = sadd.s32 %s33, 2
    %s68 = sld [smem:[#allocation5 + %s67]]
    %s69 = scalar_lea.hbm %s1, %s68
    %s70 = scalar_lea.vmem [#allocation2], 2
    %s71 = scalar_lea.sflag [#allocation3], 2
    // Predicated region
    $region18: #{tpu_custom_call.1} parent=1 // pred_check
      _
    $region19: #{tpu_custom_call.1} parent=1 // pred_check_branch
      %73 = sbr.rel target = $region21
    $region20: #{tpu_custom_call.1} parent=1 // pred_region
      %74 = sst [smem:[#allocation12]] [#allocation17]
      %75 = sst [smem:[#allocation13]] [#allocation16]
    $region21: #{tpu_custom_call.1} parent=1 // pred_fallthru
      _
    %77 = shalt.err (0)
    %s79 = sshll.u32 %s69, 4
    %s80 = int_to_ptr.hbm [resolvable:$true] %s79
    %s81 = sshll.u32 %s70, 4
    %s82 = int_to_ptr.vmem [resolvable:$true] %s81
    %84 = dma.hbm_to_vmem [thread:$0]  %s80, 16, %s82, %s71
    %s85 = sadd.s32 %s33, 3
    %s86 = sld [smem:[#allocation5 + %s85]]
    %s87 = scalar_lea.hbm %s1, %s86
    %s88 = scalar_lea.vmem [#allocation2], 3
    %s89 = scalar_lea.sflag [#allocation3], 3
    // Predicated region
    $region22: #{tpu_custom_call.1} parent=1 // pred_check
      _
    $region23: #{tpu_custom_call.1} parent=1 // pred_check_branch
      %91 = sbr.rel target = $region25
    $region24: #{tpu_custom_call.1} parent=1 // pred_region
      %92 = sst [smem:[#allocation12]] [#allocation19]
      %93 = sst [smem:[#allocation13]] [#allocation18]
    $region25: #{tpu_custom_call.1} parent=1 // pred_fallthru
      _
    %95 = shalt.err (0)
    %s97 = sshll.u32 %s87, 4
    %s98 = int_to_ptr.hbm [resolvable:$true] %s97
    %s99 = sshll.u32 %s88, 4
    %s100 = int_to_ptr.vmem [resolvable:$true] %s99
    %102 = dma.hbm_to_vmem [thread:$0]  %s98, 16, %s100, %s89
    %s103 = sadd.s32 %s33, 4
    %s104 = sld [smem:[#allocation5 + %s103]]
    %s105 = scalar_lea.hbm %s1, %s104
    %s106 = scalar_lea.vmem [#allocation2], 4
    %s107 = scalar_lea.sflag [#allocation3], 4
    // Predicated region
    $region26: #{tpu_custom_call.1} parent=1 // pred_check
      _
    $region27: #{tpu_custom_call.1} parent=1 // pred_check_branch
      %109 = sbr.rel target = $region29
    $region28: #{tpu_custom_call.1} parent=1 // pred_region
      %110 = sst [smem:[#allocation12]] [#allocation21]
      %111 = sst [smem:[#allocation13]] [#allocation20]
    $region29: #{tpu_custom_call.1} parent=1 // pred_fallthru
      _
    %113 = shalt.err (0)
    %s115 = sshll.u32 %s105, 4
    %s116 = int_to_ptr.hbm [resolvable:$true] %s115
    %s117 = sshll.u32 %s106, 4
    %s118 = int_to_ptr.vmem [resolvable:$true] %s117
    %120 = dma.hbm_to_vmem [thread:$0]  %s116, 16, %s118, %s107
    %s121 = sadd.s32 %s33, 5
    %s122 = sld [smem:[#allocation5 + %s121]]
    %s123 = scalar_lea.hbm %s1, %s122
    %s124 = scalar_lea.vmem [#allocation2], 5
    %s125 = scalar_lea.sflag [#allocation3], 5
    // Predicated region
    $region30: #{tpu_custom_call.1} parent=1 // pred_check
      _
    $region31: #{tpu_custom_call.1} parent=1 // pred_check_branch
      %127 = sbr.rel target = $region33
    $region32: #{tpu_custom_call.1} parent=1 // pred_region
      %128 = sst [smem:[#allocation12]] [#allocation23]
      %129 = sst [smem:[#allocation13]] [#allocation22]
    $region33: #{tpu_custom_call.1} parent=1 // pred_fallthru
      _
    %131 = shalt.err (0)
    %s133 = sshll.u32 %s123, 4
    %s134 = int_to_ptr.hbm [resolvable:$true] %s133
    %s135 = sshll.u32 %s124, 4
    %s136 = int_to_ptr.vmem [resolvable:$true] %s135
    %138 = dma.hbm_to_vmem [thread:$0]  %s134, 16, %s136, %s125
    %s139 = sadd.s32 %s33, 6
    %s140 = sld [smem:[#allocation5 + %s139]]
    %s141 = scalar_lea.hbm %s1, %s140
    %s142 = scalar_lea.vmem [#allocation2], 6
    %s143 = scalar_lea.sflag [#allocation3], 6
    // Predicated region
    $region34: #{tpu_custom_call.1} parent=1 // pred_check
      _
    $region35: #{tpu_custom_call.1} parent=1 // pred_check_branch
      %145 = sbr.rel target = $region37
    $region36: #{tpu_custom_call.1} parent=1 // pred_region
      %146 = sst [smem:[#allocation12]] [#allocation25]
      %147 = sst [smem:[#allocation13]] [#allocation24]
    $region37: #{tpu_custom_call.1} parent=1 // pred_fallthru
      _
    %149 = shalt.err (0)
    %s151 = sshll.u32 %s141, 4
    %s152 = int_to_ptr.hbm [resolvable:$true] %s151
    %s153 = sshll.u32 %s142, 4
    %s154 = int_to_ptr.vmem [resolvable:$true] %s153
    %156 = dma.hbm_to_vmem [thread:$0]  %s152, 16, %s154, %s143
    %s157 = sadd.s32 %s33, 7
    %s158 = sld [smem:[#allocation5 + %s157]]
    %s159 = scalar_lea.hbm %s1, %s158
    %s160 = scalar_lea.vmem [#allocation2], 7
    %s161 = scalar_lea.sflag [#allocation3], 7
    // Predicated region
    $region38: #{tpu_custom_call.1} parent=1 // pred_check
      _
    $region39: #{tpu_custom_call.1} parent=1 // pred_check_branch
      %163 = sbr.rel target = $region41
    $region40: #{tpu_custom_call.1} parent=1 // pred_region
      %164 = sst [smem:[#allocation12]] [#allocation27]
      %165 = sst [smem:[#allocation13]] [#allocation26]
    $region41: #{tpu_custom_call.1} parent=1 // pred_fallthru
      _
    %167 = shalt.err (0)
    %s169 = sshll.u32 %s159, 4
    %s170 = int_to_ptr.hbm [resolvable:$true] %s169
    %s171 = sshll.u32 %s160, 4
    %s172 = int_to_ptr.vmem [resolvable:$true] %s171
    %174 = dma.hbm_to_vmem [thread:$0]  %s170, 16, %s172, %s161
    %s175 = sadd.s32 %s33, 8
    %s176 = sld [smem:[#allocation5 + %s175]]
    %s177 = scalar_lea.hbm %s1, %s176
    %s178 = scalar_lea.vmem [#allocation2], 8
    %s179 = scalar_lea.sflag [#allocation3], 8
    // Predicated region
    $region42: #{tpu_custom_call.1} parent=1 // pred_check
      _
    $region43: #{tpu_custom_call.1} parent=1 // pred_check_branch
      %181 = sbr.rel target = $region45
    $region44: #{tpu_custom_call.1} parent=1 // pred_region
      %182 = sst [smem:[#allocation12]] [#allocation29]
      %183 = sst [smem:[#allocation13]] [#allocation28]
    $region45: #{tpu_custom_call.1} parent=1 // pred_fallthru
      _
    %185 = shalt.err (0)
    %s187 = sshll.u32 %s177, 4
    %s188 = int_to_ptr.hbm [resolvable:$true] %s187
    %s189 = sshll.u32 %s178, 4
    %s190 = int_to_ptr.vmem [resolvable:$true] %s189
    %192 = dma.hbm_to_vmem [thread:$0]  %s188, 16, %s190, %s179
    %s193 = sadd.s32 %s33, 9
    %s194 = sld [smem:[#allocation5 + %s193]]
    %s195 = scalar_lea.hbm %s1, %s194
    %s196 = scalar_lea.vmem [#allocation2], 9
    %s197 = scalar_lea.sflag [#allocation3], 9
    // Predicated region
    $region46: #{tpu_custom_call.1} parent=1 // pred_check
      _
    $region47: #{tpu_custom_call.1} parent=1 // pred_check_branch
      %199 = sbr.rel target = $region49
    $region48: #{tpu_custom_call.1} parent=1 // pred_region
      %200 = sst [smem:[#allocation12]] [#allocation31]
      %201 = sst [smem:[#allocation13]] [#allocation30]
    $region49: #{tpu_custom_call.1} parent=1 // pred_fallthru
      _
    %203 = shalt.err (0)
    %s205 = sshll.u32 %s195, 4
    %s206 = int_to_ptr.hbm [resolvable:$true] %s205
    %s207 = sshll.u32 %s196, 4
    %s208 = int_to_ptr.vmem [resolvable:$true] %s207
    %210 = dma.hbm_to_vmem [thread:$0]  %s206, 16, %s208, %s197
    %s211 = sadd.s32 %s33, 10
    %s212 = sld [smem:[#allocation5 + %s211]]
    %s213 = scalar_lea.hbm %s1, %s212
    %s214 = scalar_lea.vmem [#allocation2], 10
    %s215 = scalar_lea.sflag [#allocation3], 10
    // Predicated region
    $region50: #{tpu_custom_call.1} parent=1 // pred_check
      _
    $region51: #{tpu_custom_call.1} parent=1 // pred_check_branch
      %217 = sbr.rel target = $region53
    $region52: #{tpu_custom_call.1} parent=1 // pred_region
      %218 = sst [smem:[#allocation12]] [#allocation33]
      %219 = sst [smem:[#allocation13]] [#allocation32]
    $region53: #{tpu_custom_call.1} parent=1 // pred_fallthru
      _
    %221 = shalt.err (0)
    %s223 = sshll.u32 %s213, 4
    %s224 = int_to_ptr.hbm [resolvable:$true] %s223
    %s225 = sshll.u32 %s214, 4
    %s226 = int_to_ptr.vmem [resolvable:$true] %s225
    %228 = dma.hbm_to_vmem [thread:$0]  %s224, 16, %s226, %s215
    %s229 = sadd.s32 %s33, 11
    %s230 = sld [smem:[#allocation5 + %s229]]
    %s231 = scalar_lea.hbm %s1, %s230
    %s232 = scalar_lea.vmem [#allocation2], 11
    %s233 = scalar_lea.sflag [#allocation3], 11
    // Predicated region
    $region54: #{tpu_custom_call.1} parent=1 // pred_check
      _
    $region55: #{tpu_custom_call.1} parent=1 // pred_check_branch
      %235 = sbr.rel target = $region57
    $region56: #{tpu_custom_call.1} parent=1 // pred_region
      %236 = sst [smem:[#allocation12]] [#allocation35]
      %237 = sst [smem:[#allocation13]] [#allocation34]
    $region57: #{tpu_custom_call.1} parent=1 // pred_fallthru
      _
    %239 = shalt.err (0)
    %s241 = sshll.u32 %s231, 4
    %s242 = int_to_ptr.hbm [resolvable:$true] %s241
    %s243 = sshll.u32 %s232, 4
    %s244 = int_to_ptr.vmem [resolvable:$true] %s243
    %246 = dma.hbm_to_vmem [thread:$0]  %s242, 16, %s244, %s233
    %s247 = sadd.s32 %s33, 12
    %s248 = sld [smem:[#allocation5 + %s247]]
    %s249 = scalar_lea.hbm %s1, %s248
    %s250 = scalar_lea.vmem [#allocation2], 12
    %s251 = scalar_lea.sflag [#allocation3], 12
    // Predicated region
    $region58: #{tpu_custom_call.1} parent=1 // pred_check
      _
    $region59: #{tpu_custom_call.1} parent=1 // pred_check_branch
      %253 = sbr.rel target = $region61
    $region60: #{tpu_custom_call.1} parent=1 // pred_region
      %254 = sst [smem:[#allocation12]] [#allocation37]
      %255 = sst [smem:[#allocation13]] [#allocation36]
    $region61: #{tpu_custom_call.1} parent=1 // pred_fallthru
      _
    %257 = shalt.err (0)
    %s259 = sshll.u32 %s249, 4
    %s260 = int_to_ptr.hbm [resolvable:$true] %s259
    %s261 = sshll.u32 %s250, 4
    %s262 = int_to_ptr.vmem [resolvable:$true] %s261
    %264 = dma.hbm_to_vmem [thread:$0]  %s260, 16, %s262, %s251
    %s265 = sadd.s32 %s33, 13
    %s266 = sld [smem:[#allocation5 + %s265]]
    %s267 = scalar_lea.hbm %s1, %s266
    %s268 = scalar_lea.vmem [#allocation2], 13
    %s269 = scalar_lea.sflag [#allocation3], 13
    // Predicated region
    $region62: #{tpu_custom_call.1} parent=1 // pred_check
      _
    $region63: #{tpu_custom_call.1} parent=1 // pred_check_branch
      %271 = sbr.rel target = $region65
    $region64: #{tpu_custom_call.1} parent=1 // pred_region
      %272 = sst [smem:[#allocation12]] [#allocation39]
      %273 = sst [smem:[#allocation13]] [#allocation38]
    $region65: #{tpu_custom_call.1} parent=1 // pred_fallthru
      _
    %275 = shalt.err (0)
    %s277 = sshll.u32 %s267, 4
    %s278 = int_to_ptr.hbm [resolvable:$true] %s277
    %s279 = sshll.u32 %s268, 4
    %s280 = int_to_ptr.vmem [resolvable:$true] %s279
    %282 = dma.hbm_to_vmem [thread:$0]  %s278, 16, %s280, %s269
    %s283 = sadd.s32 %s33, 14
    %s284 = sld [smem:[#allocation5 + %s283]]
    %s285 = scalar_lea.hbm %s1, %s284
    %s286 = scalar_lea.vmem [#allocation2], 14
    %s287 = scalar_lea.sflag [#allocation3], 14
    // Predicated region
    $region66: #{tpu_custom_call.1} parent=1 // pred_check
      _
    $region67: #{tpu_custom_call.1} parent=1 // pred_check_branch
      %289 = sbr.rel target = $region69
    $region68: #{tpu_custom_call.1} parent=1 // pred_region
      %290 = sst [smem:[#allocation12]] [#allocation41]
      %291 = sst [smem:[#allocation13]] [#allocation40]
    $region69: #{tpu_custom_call.1} parent=1 // pred_fallthru
      _
    %293 = shalt.err (0)
    %s295 = sshll.u32 %s285, 4
    %s296 = int_to_ptr.hbm [resolvable:$true] %s295
    %s297 = sshll.u32 %s286, 4
    %s298 = int_to_ptr.vmem [resolvable:$true] %s297
    %300 = dma.hbm_to_vmem [thread:$0]  %s296, 16, %s298, %s287
    %s301 = sadd.s32 %s33, 15
    %s302 = sld [smem:[#allocation5 + %s301]]
    %s303 = scalar_lea.hbm %s1, %s302
    %s304 = scalar_lea.vmem [#allocation2], 15
    %s305 = scalar_lea.sflag [#allocation3], 15
    // Predicated region
    $region70: #{tpu_custom_call.1} parent=1 // pred_check
      _
    $region71: #{tpu_custom_call.1} parent=1 // pred_check_branch
      %307 = sbr.rel target = $region73
    $region72: #{tpu_custom_call.1} parent=1 // pred_region
      %308 = sst [smem:[#allocation12]] [#allocation43]
      %309 = sst [smem:[#allocation13]] [#allocation42]
    $region73: #{tpu_custom_call.1} parent=1 // pred_fallthru
      _
    %311 = shalt.err (0)
    %s313 = sshll.u32 %s303, 4
    %s314 = int_to_ptr.hbm [resolvable:$true] %s313
    %s315 = sshll.u32 %s304, 4
    %s316 = int_to_ptr.vmem [resolvable:$true] %s315
    %318 = dma.hbm_to_vmem [thread:$0]  %s314, 16, %s316, %s305
    %s319 = smul.u32 1, 1
    %s320 = sshll.u32 %s319, 4
    %321 = dma.done [#allocation3], %s320
    %s322 = sshll.u32 %s319, 4
    %323 = dma.done %s53, %s322
    %s324 = sshll.u32 %s319, 4
    %325 = dma.done %s71, %s324
    %s326 = sshll.u32 %s319, 4
    %327 = dma.done %s89, %s326
    %s328 = sshll.u32 %s319, 4
    %329 = dma.done %s107, %s328
    %s330 = sshll.u32 %s319, 4
    %331 = dma.done %s125, %s330
    %s332 = sshll.u32 %s319, 4
    %333 = dma.done %s143, %s332
    %s334 = sshll.u32 %s319, 4
    %335 = dma.done %s161, %s334
    %p336 = scmp.lt.s32.totalorder %s33, 0
    %s337 = ssub.s32 0, %s33
    %s338 = scalar_select %p336, %s337, %s33
    %s339 = sand.u32 %s338, 7
    %s340 = ssub.s32 0, %s339
    %s341 = scalar_select %p336, %s340, %s339
    %p342 = scmp.ne.s32.totalorder %s341, 0
    %p343 = scmp.lt.s32.totalorder %s341, 0
    %p344 = pnand %p343, %p342
    %p345 = pneg %p344
    %s346 = sadd.s32 %s341, 8
    %s347 = scalar_select %p345, %s346, %s341
    %v348 = vld [vmem:[#allocation2] sm:$0xff]
    %s349 = scalar_lea.vmem [#allocation6], %s347
    %v350 = vld [vmem:[%s349] sm:$0xff]
    %v351 = vadd.f32 %v348, %v350
    %352 = vst [vmem:[#allocation9] sm:$0xff] %v351
    %s353 = sshll.u32 %s319, 4
    %354 = dma.done %s179, %s353
    %s355 = sshll.u32 %s319, 4
    %356 = dma.done %s197, %s355
    %s357 = sshll.u32 %s319, 4
    %358 = dma.done %s215, %s357
    %s359 = sshll.u32 %s319, 4
    %360 = dma.done %s233, %s359
    %s361 = sshll.u32 %s319, 4
    %362 = dma.done %s251, %s361
    %s363 = sshll.u32 %s319, 4
    %364 = dma.done %s269, %s363
    %s365 = sshll.u32 %s319, 4
    %366 = dma.done %s287, %s365
    %s367 = sshll.u32 %s319, 4
    %368 = dma.done %s305, %s367
    %p369 = scmp.lt.s32.totalorder %s175, 0
    %s370 = ssub.s32 0, %s175
    %s371 = scalar_select %p369, %s370, %s175
    %s372 = sand.u32 %s371, 7
    %s373 = ssub.s32 0, %s372
    %s374 = scalar_select %p369, %s373, %s372
    %p375 = scmp.ne.s32.totalorder %s374, 0
    %p376 = scmp.lt.s32.totalorder %s374, 0
    %p377 = pnand %p376, %p375
    %p378 = pneg %p377
    %s379 = sadd.s32 %s374, 8
    %s380 = scalar_select %p378, %s379, %s374
    %v381 = vld [vmem:[%s178] sm:$0xff]
    %s382 = scalar_lea.vmem [#allocation6], %s380
    %v383 = vld [vmem:[%s382] sm:$0xff]
    %v384 = vadd.f32 %v381, %v383
    %s385 = scalar_lea.vmem [#allocation9], 8
    %386 = vst [vmem:[%s385] sm:$0xff] %v384
    // Predicated region
    $region74: #{tpu_custom_call.1} parent=1 // pred_check
      _
    $region75: #{tpu_custom_call.1} parent=1 // pred_check_branch
      %388 = sbr.rel (0) target = $region77
    $region76: #{tpu_custom_call.1} parent=1 // pred_region
      %390 = vsyncadd [#allocation8], 0
      %s391 = sshll.u32 [#allocation9], 4
      %s392 = int_to_ptr.vmem [resolvable:$true] %s391
      %s393 = sshll.u32 %s3, 4
      %s394 = int_to_ptr.hbm [resolvable:$true] %s393
      %399 = dma.vmem_to_hbm [thread:$0]  %s392, 256, %s394, [#allocation8], 128, 128, 8
    $region77: #{tpu_custom_call.1} parent=1 // pred_fallthru
      _
    // Predicated region
    $region78: #{tpu_custom_call.1} parent=1 // pred_check
      _
    $region79: #{tpu_custom_call.1} parent=1 // pred_check_branch
      %401 = sbr.rel (0) target = $region81
    $region80: #{tpu_custom_call.1} parent=1 // pred_region
      %403 = dma.done [#allocation8], 256
    $region81: #{tpu_custom_call.1} parent=1 // pred_fallthru
      _
    %404 = vsyncpa [#allocation7], 1
    %405 = vsyncpa [#allocation8], 1
  %406 = vsyncmov [#allocation3]
  %s407 = vpop.sfrf %406
  %p408 = scmp.eq.s32.totalorder %s407, 0
  %p409 = pneg %p408
  %411 = shalt.err (%p409)
  %s412 = scalar_lea.sflag [#allocation3], 1
  %413 = vsyncmov %s412
  %s414 = vpop.sfrf %413
  %p415 = scmp.eq.s32.totalorder %s414, 0
  %p416 = pneg %p415
  %418 = shalt.err (%p416)
  %s419 = scalar_lea.sflag [#allocation3], 2
  %420 = vsyncmov %s419
  %s421 = vpop.sfrf %420
  %p422 = scmp.eq.s32.totalorder %s421, 0
  %p423 = pneg %p422
  %425 = shalt.err (%p423)
  %s426 = scalar_lea.sflag [#allocation3], 3
  %427 = vsyncmov %s426
  %s428 = vpop.sfrf %427
  %p429 = scmp.eq.s32.totalorder %s428, 0
  %p430 = pneg %p429
  %432 = shalt.err (%p430)
  %s433 = scalar_lea.sflag [#allocation3], 4
  %434 = vsyncmov %s433
  %s435 = vpop.sfrf %434
  %p436 = scmp.eq.s32.totalorder %s435, 0
  %p437 = pneg %p436
  %439 = shalt.err (%p437)
  %s440 = scalar_lea.sflag [#allocation3], 5
  %441 = vsyncmov %s440
  %s442 = vpop.sfrf %441
  %p443 = scmp.eq.s32.totalorder %s442, 0
  %p444 = pneg %p443
  %446 = shalt.err (%p444)
  %s447 = scalar_lea.sflag [#allocation3], 6
  %448 = vsyncmov %s447
  %s449 = vpop.sfrf %448
  %p450 = scmp.eq.s32.totalorder %s449, 0
  %p451 = pneg %p450
  %453 = shalt.err (%p451)
  %s454 = scalar_lea.sflag [#allocation3], 7
  %455 = vsyncmov %s454
  %s456 = vpop.sfrf %455
  %p457 = scmp.eq.s32.totalorder %s456, 0
  %p458 = pneg %p457
  %460 = shalt.err (%p458)
  %s461 = scalar_lea.sflag [#allocation3], 8
  %462 = vsyncmov %s461
  %s463 = vpop.sfrf %462
  %p464 = scmp.eq.s32.totalorder %s463, 0
  %p465 = pneg %p464
  %467 = shalt.err (%p465)
  %s468 = scalar_lea.sflag [#allocation3], 9
  %469 = vsyncmov %s468
  %s470 = vpop.sfrf %469
  %p471 = scmp.eq.s32.totalorder %s470, 0
  %p472 = pneg %p471
  %474 = shalt.err (%p472)
  %s475 = scalar_lea.sflag [#allocation3], 10
  %476 = vsyncmov %s475
  %s477 = vpop.sfrf %476
  %p478 = scmp.eq.s32.totalorder %s477, 0
  %p479 = pneg %p478
  %481 = shalt.err (%p479)
  %s482 = scalar_lea.sflag [#allocation3], 11
  %483 = vsyncmov %s482
  %s484 = vpop.sfrf %483
  %p485 = scmp.eq.s32.totalorder %s484, 0
  %p486 = pneg %p485
  %488 = shalt.err (%p486)
  %s489 = scalar_lea.sflag [#allocation3], 12
  %490 = vsyncmov %s489
  %s491 = vpop.sfrf %490
  %p492 = scmp.eq.s32.totalorder %s491, 0
  %p493 = pneg %p492
  %495 = shalt.err (%p493)
  %s496 = scalar_lea.sflag [#allocation3], 13
  %497 = vsyncmov %s496
  %s498 = vpop.sfrf %497
  %p499 = scmp.eq.s32.totalorder %s498, 0
  %p500 = pneg %p499
  %502 = shalt.err (%p500)
  %s503 = scalar_lea.sflag [#allocation3], 14
  %504 = vsyncmov %s503
  %s505 = vpop.sfrf %504
  %p506 = scmp.eq.s32.totalorder %s505, 0
  %p507 = pneg %p506
  %509 = shalt.err (%p507)
  %s510 = scalar_lea.sflag [#allocation3], 15
  %511 = vsyncmov %s510
  %s512 = vpop.sfrf %511
  %p513 = scmp.eq.s32.totalorder %s512, 0
  %p514 = pneg %p513
  %516 = shalt.err (%p514)

</llo_original>
